<compile_context>
chip_gen: v6e
topology: v6e:2x2x1
jax: 0.10.0
libtpu: 0.0.40
codegen_flags: <defaults>
</compile_context>

<pallas_src>
import functools
import math

import jax
import jax.numpy as jnp
from jax.experimental import pallas as pl
from jax.experimental.pallas import tpu as pltpu

_SELU_ALPHA = 1.6732632423543772
_SELU_SCALE = 1.0507009873554805


def _expm1_stable(y):
    # expm1 without relying on a lax.expm1 lowering: 2nd-order Taylor where
    # exp(y)-1 would catastrophically cancel, exp(y)-1 elsewhere.
    small = jnp.abs(y) < 1e-3
    return jnp.where(small, y * (1.0 + 0.5 * y), jnp.exp(y) - 1.0)


def _selu_f32(y):
    return _SELU_SCALE * jnp.where(y > 0, y, _SELU_ALPHA * _expm1_stable(y))


def _make_fused_kernel(n_layers, last_layer_activations):
    """Kernel: encoder + decoder, 2*n_layers matmuls unrolled, all in VMEM."""
    last = n_layers - 1

    def kernel(*refs):
        x_ref = refs[0]
        o_ref = refs[-1]
        p = refs[1:-1]
        enc_w = p[0:n_layers]                       # (in, out) bf16
        enc_b = p[n_layers:2 * n_layers]            # (1, out) f32
        dec_w = p[2 * n_layers:3 * n_layers]        # (in, out) bf16
        dec_b = p[3 * n_layers:4 * n_layers]        # (1, out) f32

        h = x_ref[...]                              # (TB, d_in) f32
        # ---- encode ----
        for i in range(n_layers):
            y = jnp.dot(h.astype(jnp.bfloat16), enc_w[i][...],
                        preferred_element_type=jnp.float32)
            h = _selu_f32(y + enc_b[i][...])        # single broadcast per layer
        # dropout: eval mode -> identity
        # ---- decode (constrained: reversed encoder weights, transposed) ----
        for i in range(n_layers):
            y = jnp.dot(h.astype(jnp.bfloat16), dec_w[i][...],
                        preferred_element_type=jnp.float32)
            y = y + dec_b[i][...]
            h = _selu_f32(y) if (i != last or last_layer_activations) else y
        o_ref[...] = h.astype(o_ref.dtype)

    return kernel


def prepare_params(encode_w, encode_b, decode_b):
    """One-time packing of PyTorch-layout params into kernel layout.

    encode_w[i]: (out, in) f32  ->  enc_w_io[i]: (in, out) bf16  (x @ W^T path)
    constrained decoder weight i = reversed(encode_w)[i], already (in, out) -> bf16
    biases -> (1, N) f32
    """
    enc_w_io = [jnp.asarray(w).T.astype(jnp.bfloat16) for w in encode_w]
    dec_w_io = [jnp.asarray(w).astype(jnp.bfloat16) for w in reversed(encode_w)]
    enc_b2 = [jnp.asarray(b).reshape(1, -1).astype(jnp.float32) for b in encode_b]
    dec_b2 = [jnp.asarray(b).reshape(1, -1).astype(jnp.float32) for b in decode_b]
    return enc_w_io, enc_b2, dec_w_io, dec_b2


def _round_up(x, m):
    return ((x + m - 1) // m) * m


@functools.partial(jax.jit,
                   static_argnames=("batch_tile", "last_layer_activations"))
def autoencoder_forward(x, params, *, batch_tile=128,
                        last_layer_activations=True):
    """forward = decode(encode(x)); constrained decoder, nl_type='selu'."""
    enc_w, enc_b, dec_w, dec_b = params
    n_layers = len(enc_w)
    B, d_in = x.shape
    assert d_in == enc_w[0].shape[0]
    d_out = dec_w[-1].shape[1]

    # Batch tile: >=8-row multiple (sublane), capped at batch_tile; pad batch.
    tb = min(batch_tile, _round_up(B, 8))
    bp = _round_up(B, tb)
    xp = jnp.pad(x, ((0, bp - B), (0, 0))) if bp != B else x

    flat = list(enc_w) + list(enc_b) + list(dec_w) + list(dec_b)
    in_specs = [pl.BlockSpec((tb, d_in), lambda i: (i, 0))]
    # Weights / biases: whole-array blocks with constant index_map ->
    # VMEM-resident across all batch tiles (total ~160 KiB for this model).
    in_specs += [pl.BlockSpec(p.shape, lambda i: (0, 0)) for p in flat]

    out = pl.pallas_call(
        _make_fused_kernel(n_layers, last_layer_activations),
        out_shape=jax.ShapeDtypeStruct((bp, d_out), jnp.float32),
        grid=(bp // tb,),
        in_specs=in_specs,
        out_specs=pl.BlockSpec((tb, d_out), lambda i: (i, 0)),
        compiler_params=pltpu.CompilerParams(
            dimension_semantics=("parallel",)),   # shards across TCs on v7x
    )(xp, *flat)
    return out[:B] if bp != B else out


def init_autoencoder_params(key, layer_sizes):
    """Deterministic init mirroring the PyTorch module shapes.

    encode_w[i]: (layer_sizes[i+1], layer_sizes[i])  -- xavier_uniform
    encode_b[i]: (layer_sizes[i+1],)                 -- zeros
    decode_b[i]: (reversed[i+1],)                    -- zeros
    """
    n_layers = len(layer_sizes) - 1
    keys = jax.random.split(key, n_layers)
    encode_w, encode_b = [], []
    for i in range(n_layers):
        fan_in, fan_out = layer_sizes[i], layer_sizes[i + 1]
        limit = math.sqrt(6.0 / (fan_in + fan_out))
        w = jax.random.uniform(keys[i], (fan_out, fan_in),
                               minval=-limit, maxval=limit, dtype=jnp.float32)
        encode_w.append(w)
        encode_b.append(jnp.zeros((fan_out,), jnp.float32))
    rev = list(reversed(layer_sizes))
    decode_b = [jnp.zeros((rev[i + 1],), jnp.float32) for i in range(n_layers)]
    return encode_w, encode_b, decode_b


def reference_forward(x, encode_w, encode_b, decode_b,
                      last_layer_activations=True):
    """Pure-JAX f32 reference of the same PyTorch semantics."""
    def selu(v):
        return _SELU_SCALE * jnp.where(v > 0, v, _SELU_ALPHA * jnp.expm1(v))
    n = len(encode_w)
    last = n - 1
    h = x
    for i in range(n):
        h = selu(h @ encode_w[i].T + encode_b[i])
    z = h
    for ind, w in enumerate(reversed(encode_w)):
        y = z @ w + decode_b[ind]
        z = selu(y) if (ind != last or last_layer_activations) else y
    return z


if __name__ == "__main__":
    # AutoEncoder: 256 -> 128 -> 64 (z) -> 128 -> 256, constrained decoder.
    layer_sizes = [256, 128, 64]

    key = jax.random.PRNGKey(0)
    k_param, k_x = jax.random.split(key)
    encode_w, encode_b, decode_b = init_autoencoder_params(k_param, layer_sizes)
    params = prepare_params(encode_w, encode_b, decode_b)   # one-time packing

    # Two batch sizes: multi-tile grid (256 rows / 2 tiles) and tiny batch.
    for batch in (256, 8):
        x = jax.random.normal(jax.random.fold_in(k_x, batch),
                              (batch, layer_sizes[0]), dtype=jnp.float32)
        out = jax.block_until_ready(autoencoder_forward(x, params))
        assert out.shape == (batch, layer_sizes[0]), out.shape

        ref = reference_forward(x, encode_w, encode_b, decode_b)
        # bf16 MXU operands (f32 accumulate) vs a pure-f32 reference: expect
        # ~1e-2 absolute drift across the 4 chained layers at these widths.
        max_err = float(jnp.max(jnp.abs(out - ref)))
        assert jnp.allclose(out, ref, atol=5e-2, rtol=5e-2), max_err

    print("KERNEL_OK")
</pallas_src>

<mosaic_0001>
module attributes {stable_mosaic.version = 11 : i64} {
  func.func @kernel(%arg0: i32, %arg1: memref<128x256xf32, #tpu.memory_space<vmem>>, %arg2: memref<256x128xbf16, #tpu.memory_space<vmem>>, %arg3: memref<128x64xbf16, #tpu.memory_space<vmem>>, %arg4: memref<1x128xf32, #tpu.memory_space<vmem>>, %arg5: memref<1x64xf32, #tpu.memory_space<vmem>>, %arg6: memref<64x128xbf16, #tpu.memory_space<vmem>>, %arg7: memref<128x256xbf16, #tpu.memory_space<vmem>>, %arg8: memref<1x128xf32, #tpu.memory_space<vmem>>, %arg9: memref<1x256xf32, #tpu.memory_space<vmem>>, %arg10: memref<128x256xf32, #tpu.memory_space<vmem>>) attributes {dimension_semantics = [#tpu.dimension_semantics<parallel>], iteration_bounds = array<i64: 2>, scalar_prefetch = 0 : i64, scratch_operands = 0 : i64, tpu.core_type = #tpu.core_type<tc>, window_params = [{transform_indices = @transform_0, window_bounds = array<i64: 128, 256>}, {pipeline_mode = #tpu.pipeline_mode<synchronous>, transform_indices = @transform_1, window_bounds = array<i64: 256, 128>}, {pipeline_mode = #tpu.pipeline_mode<synchronous>, transform_indices = @transform_2, window_bounds = array<i64: 128, 64>}, {pipeline_mode = #tpu.pipeline_mode<synchronous>, transform_indices = @transform_3, window_bounds = array<i64: 1, 128>}, {pipeline_mode = #tpu.pipeline_mode<synchronous>, transform_indices = @transform_4, window_bounds = array<i64: 1, 64>}, {pipeline_mode = #tpu.pipeline_mode<synchronous>, transform_indices = @transform_5, window_bounds = array<i64: 64, 128>}, {pipeline_mode = #tpu.pipeline_mode<synchronous>, transform_indices = @transform_6, window_bounds = array<i64: 128, 256>}, {pipeline_mode = #tpu.pipeline_mode<synchronous>, transform_indices = @transform_7, window_bounds = array<i64: 1, 128>}, {pipeline_mode = #tpu.pipeline_mode<synchronous>, transform_indices = @transform_8, window_bounds = array<i64: 1, 256>}, {transform_indices = @transform_9, window_bounds = array<i64: 128, 256>}]} {
    %c0 = arith.constant 0 : index
    %c0_0 = arith.constant 0 : index
    %0 = vector.load %arg1[%c0, %c0_0] : memref<128x256xf32, #tpu.memory_space<vmem>>, vector<128x256xf32>
    %1 = arith.truncf %0 : vector<128x256xf32> to vector<128x256xbf16>
    %c0_1 = arith.constant 0 : index
    %c0_2 = arith.constant 0 : index
    %2 = vector.load %arg2[%c0_1, %c0_2] : memref<256x128xbf16, #tpu.memory_space<vmem>>, vector<256x128xbf16>
    %cst = arith.constant dense<0.000000e+00> : vector<128x128xf32>
    %3 = tpu.matmul %1, %2, %cst {dimension_numbers = #tpu.dot_dimension_numbers<[1], [0], [0], [1], [0, 0, 1, 1], [], []>} : vector<128x256xbf16>, vector<256x128xbf16>, vector<128x128xf32> -> vector<128x128xf32>
    %c0_3 = arith.constant 0 : index
    %c0_4 = arith.constant 0 : index
    %4 = vector.load %arg4[%c0_3, %c0_4] : memref<1x128xf32, #tpu.memory_space<vmem>>, vector<1x128xf32>
    %5 = vector.broadcast %4 : vector<1x128xf32> to vector<128x128xf32>
    %6 = arith.addf %3, %5 : vector<128x128xf32>
    %cst_5 = arith.constant 0.000000e+00 : f32
    %7 = vector.broadcast %cst_5 : f32 to vector<128x128xf32>
    %8 = arith.cmpf ogt, %6, %7 : vector<128x128xf32>
    %9 = math.absf %6 : vector<128x128xf32>
    %cst_6 = arith.constant 1.000000e-03 : f32
    %10 = vector.broadcast %cst_6 : f32 to vector<128x128xf32>
    %11 = arith.cmpf olt, %9, %10 : vector<128x128xf32>
    %cst_7 = arith.constant 5.000000e-01 : f32
    %12 = vector.broadcast %cst_7 : f32 to vector<128x128xf32>
    %13 = arith.mulf %12, %6 : vector<128x128xf32>
    %cst_8 = arith.constant 1.000000e+00 : f32
    %14 = vector.broadcast %cst_8 : f32 to vector<128x128xf32>
    %15 = arith.addf %14, %13 : vector<128x128xf32>
    %16 = arith.mulf %6, %15 : vector<128x128xf32>
    %17 = math.exp %6 : vector<128x128xf32>
    %cst_9 = arith.constant 1.000000e+00 : f32
    %18 = vector.broadcast %cst_9 : f32 to vector<128x128xf32>
    %19 = arith.subf %17, %18 : vector<128x128xf32>
    %20 = arith.select %11, %16, %19 : vector<128x128xi1>, vector<128x128xf32>
    %cst_10 = arith.constant 1.67326319 : f32
    %21 = vector.broadcast %cst_10 : f32 to vector<128x128xf32>
    %22 = arith.mulf %21, %20 : vector<128x128xf32>
    %23 = arith.select %8, %6, %22 : vector<128x128xi1>, vector<128x128xf32>
    %cst_11 = arith.constant 1.05070102 : f32
    %24 = vector.broadcast %cst_11 : f32 to vector<128x128xf32>
    %25 = arith.mulf %24, %23 : vector<128x128xf32>
    %26 = arith.truncf %25 : vector<128x128xf32> to vector<128x128xbf16>
    %c0_12 = arith.constant 0 : index
    %c0_13 = arith.constant 0 : index
    %27 = vector.load %arg3[%c0_12, %c0_13] : memref<128x64xbf16, #tpu.memory_space<vmem>>, vector<128x64xbf16>
    %cst_14 = arith.constant dense<0.000000e+00> : vector<128x64xf32>
    %28 = tpu.matmul %26, %27, %cst_14 {dimension_numbers = #tpu.dot_dimension_numbers<[1], [0], [0], [1], [0, 0, 1, 1], [], []>} : vector<128x128xbf16>, vector<128x64xbf16>, vector<128x64xf32> -> vector<128x64xf32>
    %c0_15 = arith.constant 0 : index
    %c0_16 = arith.constant 0 : index
    %29 = vector.load %arg5[%c0_15, %c0_16] : memref<1x64xf32, #tpu.memory_space<vmem>>, vector<1x64xf32>
    %30 = vector.broadcast %29 : vector<1x64xf32> to vector<128x64xf32>
    %31 = arith.addf %28, %30 : vector<128x64xf32>
    %cst_17 = arith.constant 0.000000e+00 : f32
    %32 = vector.broadcast %cst_17 : f32 to vector<128x64xf32>
    %33 = arith.cmpf ogt, %31, %32 : vector<128x64xf32>
    %34 = math.absf %31 : vector<128x64xf32>
    %cst_18 = arith.constant 1.000000e-03 : f32
    %35 = vector.broadcast %cst_18 : f32 to vector<128x64xf32>
    %36 = arith.cmpf olt, %34, %35 : vector<128x64xf32>
    %cst_19 = arith.constant 5.000000e-01 : f32
    %37 = vector.broadcast %cst_19 : f32 to vector<128x64xf32>
    %38 = arith.mulf %37, %31 : vector<128x64xf32>
    %cst_20 = arith.constant 1.000000e+00 : f32
    %39 = vector.broadcast %cst_20 : f32 to vector<128x64xf32>
    %40 = arith.addf %39, %38 : vector<128x64xf32>
    %41 = arith.mulf %31, %40 : vector<128x64xf32>
    %42 = math.exp %31 : vector<128x64xf32>
    %cst_21 = arith.constant 1.000000e+00 : f32
    %43 = vector.broadcast %cst_21 : f32 to vector<128x64xf32>
    %44 = arith.subf %42, %43 : vector<128x64xf32>
    %45 = arith.select %36, %41, %44 : vector<128x64xi1>, vector<128x64xf32>
    %cst_22 = arith.constant 1.67326319 : f32
    %46 = vector.broadcast %cst_22 : f32 to vector<128x64xf32>
    %47 = arith.mulf %46, %45 : vector<128x64xf32>
    %48 = arith.select %33, %31, %47 : vector<128x64xi1>, vector<128x64xf32>
    %cst_23 = arith.constant 1.05070102 : f32
    %49 = vector.broadcast %cst_23 : f32 to vector<128x64xf32>
    %50 = arith.mulf %49, %48 : vector<128x64xf32>
    %51 = arith.truncf %50 : vector<128x64xf32> to vector<128x64xbf16>
    %c0_24 = arith.constant 0 : index
    %c0_25 = arith.constant 0 : index
    %52 = vector.load %arg6[%c0_24, %c0_25] : memref<64x128xbf16, #tpu.memory_space<vmem>>, vector<64x128xbf16>
    %cst_26 = arith.constant dense<0.000000e+00> : vector<128x128xf32>
    %53 = tpu.matmul %51, %52, %cst_26 {dimension_numbers = #tpu.dot_dimension_numbers<[1], [0], [0], [1], [0, 0, 1, 1], [], []>} : vector<128x64xbf16>, vector<64x128xbf16>, vector<128x128xf32> -> vector<128x128xf32>
    %c0_27 = arith.constant 0 : index
    %c0_28 = arith.constant 0 : index
    %54 = vector.load %arg8[%c0_27, %c0_28] : memref<1x128xf32, #tpu.memory_space<vmem>>, vector<1x128xf32>
    %55 = vector.broadcast %54 : vector<1x128xf32> to vector<128x128xf32>
    %56 = arith.addf %53, %55 : vector<128x128xf32>
    %cst_29 = arith.constant 0.000000e+00 : f32
    %57 = vector.broadcast %cst_29 : f32 to vector<128x128xf32>
    %58 = arith.cmpf ogt, %56, %57 : vector<128x128xf32>
    %59 = math.absf %56 : vector<128x128xf32>
    %cst_30 = arith.constant 1.000000e-03 : f32
    %60 = vector.broadcast %cst_30 : f32 to vector<128x128xf32>
    %61 = arith.cmpf olt, %59, %60 : vector<128x128xf32>
    %cst_31 = arith.constant 5.000000e-01 : f32
    %62 = vector.broadcast %cst_31 : f32 to vector<128x128xf32>
    %63 = arith.mulf %62, %56 : vector<128x128xf32>
    %cst_32 = arith.constant 1.000000e+00 : f32
    %64 = vector.broadcast %cst_32 : f32 to vector<128x128xf32>
    %65 = arith.addf %64, %63 : vector<128x128xf32>
    %66 = arith.mulf %56, %65 : vector<128x128xf32>
    %67 = math.exp %56 : vector<128x128xf32>
    %cst_33 = arith.constant 1.000000e+00 : f32
    %68 = vector.broadcast %cst_33 : f32 to vector<128x128xf32>
    %69 = arith.subf %67, %68 : vector<128x128xf32>
    %70 = arith.select %61, %66, %69 : vector<128x128xi1>, vector<128x128xf32>
    %cst_34 = arith.constant 1.67326319 : f32
    %71 = vector.broadcast %cst_34 : f32 to vector<128x128xf32>
    %72 = arith.mulf %71, %70 : vector<128x128xf32>
    %73 = arith.select %58, %56, %72 : vector<128x128xi1>, vector<128x128xf32>
    %cst_35 = arith.constant 1.05070102 : f32
    %74 = vector.broadcast %cst_35 : f32 to vector<128x128xf32>
    %75 = arith.mulf %74, %73 : vector<128x128xf32>
    %76 = arith.truncf %75 : vector<128x128xf32> to vector<128x128xbf16>
    %c0_36 = arith.constant 0 : index
    %c0_37 = arith.constant 0 : index
    %77 = vector.load %arg7[%c0_36, %c0_37] : memref<128x256xbf16, #tpu.memory_space<vmem>>, vector<128x256xbf16>
    %cst_38 = arith.constant dense<0.000000e+00> : vector<128x256xf32>
    %78 = tpu.matmul %76, %77, %cst_38 {dimension_numbers = #tpu.dot_dimension_numbers<[1], [0], [0], [1], [0, 0, 1, 1], [], []>} : vector<128x128xbf16>, vector<128x256xbf16>, vector<128x256xf32> -> vector<128x256xf32>
    %c0_39 = arith.constant 0 : index
    %c0_40 = arith.constant 0 : index
    %79 = vector.load %arg9[%c0_39, %c0_40] : memref<1x256xf32, #tpu.memory_space<vmem>>, vector<1x256xf32>
    %80 = vector.broadcast %79 : vector<1x256xf32> to vector<128x256xf32>
    %81 = arith.addf %78, %80 : vector<128x256xf32>
    %cst_41 = arith.constant 0.000000e+00 : f32
    %82 = vector.broadcast %cst_41 : f32 to vector<128x256xf32>
    %83 = arith.cmpf ogt, %81, %82 : vector<128x256xf32>
    %84 = math.absf %81 : vector<128x256xf32>
    %cst_42 = arith.constant 1.000000e-03 : f32
    %85 = vector.broadcast %cst_42 : f32 to vector<128x256xf32>
    %86 = arith.cmpf olt, %84, %85 : vector<128x256xf32>
    %cst_43 = arith.constant 5.000000e-01 : f32
    %87 = vector.broadcast %cst_43 : f32 to vector<128x256xf32>
    %88 = arith.mulf %87, %81 : vector<128x256xf32>
    %cst_44 = arith.constant 1.000000e+00 : f32
    %89 = vector.broadcast %cst_44 : f32 to vector<128x256xf32>
    %90 = arith.addf %89, %88 : vector<128x256xf32>
    %91 = arith.mulf %81, %90 : vector<128x256xf32>
    %92 = math.exp %81 : vector<128x256xf32>
    %cst_45 = arith.constant 1.000000e+00 : f32
    %93 = vector.broadcast %cst_45 : f32 to vector<128x256xf32>
    %94 = arith.subf %92, %93 : vector<128x256xf32>
    %95 = arith.select %86, %91, %94 : vector<128x256xi1>, vector<128x256xf32>
    %cst_46 = arith.constant 1.67326319 : f32
    %96 = vector.broadcast %cst_46 : f32 to vector<128x256xf32>
    %97 = arith.mulf %96, %95 : vector<128x256xf32>
    %98 = arith.select %83, %81, %97 : vector<128x256xi1>, vector<128x256xf32>
    %cst_47 = arith.constant 1.05070102 : f32
    %99 = vector.broadcast %cst_47 : f32 to vector<128x256xf32>
    %100 = arith.mulf %99, %98 : vector<128x256xf32>
    %c0_48 = arith.constant 0 : index
    %c0_49 = arith.constant 0 : index
    %101 = vector.load %arg10[%c0_48, %c0_49] : memref<128x256xf32, #tpu.memory_space<vmem>>, vector<128x256xf32>
    tpu.vector_store %arg10[%c0_48, %c0_49], %100 {strides = array<i32>} : memref<128x256xf32, #tpu.memory_space<vmem>>, vector<128x256xf32>,
    return
  }
  func.func @transform_0(%arg0: i32) -> (i32, i32) {
    %c0_i32 = arith.constant 0 : i32
    %c0_i32_0 = arith.constant 0 : i32
    return %arg0, %c0_i32 : i32, i32
  }
  func.func @transform_1(%arg0: i32) -> (i32, i32) {
    %c0_i32 = arith.constant 0 : i32
    %c0_i32_0 = arith.constant 0 : i32
    %c0_i32_1 = arith.constant 0 : i32
    return %c0_i32, %c0_i32_0 : i32, i32
  }
  func.func @transform_2(%arg0: i32) -> (i32, i32) {
    %c0_i32 = arith.constant 0 : i32
    %c0_i32_0 = arith.constant 0 : i32
    %c0_i32_1 = arith.constant 0 : i32
    return %c0_i32, %c0_i32_0 : i32, i32
  }
  func.func @transform_3(%arg0: i32) -> (i32, i32) {
    %c0_i32 = arith.constant 0 : i32
    %c0_i32_0 = arith.constant 0 : i32
    %c0_i32_1 = arith.constant 0 : i32
    return %c0_i32, %c0_i32_0 : i32, i32
  }
  func.func @transform_4(%arg0: i32) -> (i32, i32) {
    %c0_i32 = arith.constant 0 : i32
    %c0_i32_0 = arith.constant 0 : i32
    %c0_i32_1 = arith.constant 0 : i32
    return %c0_i32, %c0_i32_0 : i32, i32
  }
  func.func @transform_5(%arg0: i32) -> (i32, i32) {
    %c0_i32 = arith.constant 0 : i32
    %c0_i32_0 = arith.constant 0 : i32
    %c0_i32_1 = arith.constant 0 : i32
    return %c0_i32, %c0_i32_0 : i32, i32
  }
  func.func @transform_6(%arg0: i32) -> (i32, i32) {
    %c0_i32 = arith.constant 0 : i32
    %c0_i32_0 = arith.constant 0 : i32
    %c0_i32_1 = arith.constant 0 : i32
    return %c0_i32, %c0_i32_0 : i32, i32
  }
  func.func @transform_7(%arg0: i32) -> (i32, i32) {
    %c0_i32 = arith.constant 0 : i32
    %c0_i32_0 = arith.constant 0 : i32
    %c0_i32_1 = arith.constant 0 : i32
    return %c0_i32, %c0_i32_0 : i32, i32
  }
  func.func @transform_8(%arg0: i32) -> (i32, i32) {
    %c0_i32 = arith.constant 0 : i32
    %c0_i32_0 = arith.constant 0 : i32
    %c0_i32_1 = arith.constant 0 : i32
    return %c0_i32, %c0_i32_0 : i32, i32
  }
  func.func @transform_9(%arg0: i32) -> (i32, i32) {
    %c0_i32 = arith.constant 0 : i32
    %c0_i32_0 = arith.constant 0 : i32
    return %arg0, %c0_i32 : i32, i32
  }
}

</mosaic_0001>

<llo_original>
// kernel: autoencoder_forward.1
$region0: #{autoencoder_forward.1}
  #allocation0 [shape = 'u32[]', space=smem, size = 0x4, offset = 0x4, fixed_abs, tag = 'smem constant byte address 0x4 - core index']
  #allocation1 [shape = 'u32[144,128]{1,0:T(1,128)}', space=vmem, size = 0x12000, scoped, tag = 'internal scratch']
  %s0 = inlined_call_operand.hbm [shape: f32[256,256], index: 0, kind: input, shape index: {}]
  %s1 = inlined_call_operand.hbm [shape: bf16[256,128], index: 1, kind: input, shape index: {}]
  %s2 = inlined_call_operand.vmem [shape: bf16[128,64], index: 2, kind: input, shape index: {}]
  %s3 = inlined_call_operand.vmem [shape: f32[1,128], index: 3, kind: input, shape index: {}]
  %s4 = inlined_call_operand.vmem [shape: f32[1,64], index: 4, kind: input, shape index: {}]
  %s5 = inlined_call_operand.vmem [shape: bf16[64,128], index: 5, kind: input, shape index: {}]
  %s6 = inlined_call_operand.hbm [shape: bf16[128,256], index: 6, kind: input, shape index: {}]
  %s7 = inlined_call_operand.vmem [shape: f32[1,128], index: 7, kind: input, shape index: {}]
  %s8 = inlined_call_operand.vmem [shape: f32[1,256], index: 8, kind: input, shape index: {}]
  %s9 = inlined_call_operand.hbm [shape: f32[256,256], index: 9, kind: output, shape index: {}]
  %s10 = sld [smem:[#allocation0]]
  $region81: #{autoencoder_forward.1} parent=0
    _
  %s12 = ssub.s32 1, %s10
  %s13 = scalar_select 0, %s12, %s10
  $region1: #{autoencoder_forward.1} parent=0
    #allocation2 [shape = 'u8[262144]{0}', space=vmem, size = 0x40000, scoped, tag = 'input window, operand 0']
    #allocation3 [shape = 's32[2]{0}', space=sflag, size = 0x8, scoped, tag = 'scoped memory for autoencoder_forward.1']
    #allocation4 [shape = 's32[2]{0}', space=sflag, size = 0x8, scoped, tag = 'scoped memory for autoencoder_forward.1']
    #allocation5 [shape = 'u8[65536]{0}', space=vmem, size = 0x10000, scoped, tag = 'input window, operand 1, single buffered']
    #allocation6 [shape = 's32[1]{0}', space=sflag, size = 0x4, scoped, tag = 'scoped memory for autoencoder_forward.1']
    #allocation7 [shape = 'u8[65536]{0}', space=vmem, size = 0x10000, scoped, tag = 'input window, operand 6, single buffered']
    #allocation8 [shape = 'u8[262144]{0}', space=vmem, size = 0x40000, scoped, tag = 'output window, operand 0']
    %14 = vsyncpa [#allocation3], 0
    %s15 = scalar_lea.sflag [#allocation3], 1
    %16 = vsyncpa %s15, 0
    %17 = vsyncpa [#allocation6], 0
    %18 = vsyncpa [#allocation4], 0
    %s19 = scalar_lea.sflag [#allocation4], 1
    %20 = vsyncpa %s19, 0
    loop: start=0, step=1, limit=4
    $region2: #{autoencoder_forward.1} parent=1 // loop_pre_header
      _
    $region3: #{autoencoder_forward.1} parent=1 // loop_header
      %s22 = sphi 0, %s26
      %p23 = scmp.ge.s32.totalorder %s22, 4
      %s32 = sphi 0, %s34
      %s35 = sphi 0, %s32
      %s36 = sphi 0, %s35
      %s52 = sphi 0, %s36
      %s56 = sphi 0, %s56
      %s58 = sphi 0, %s56
      %s59 = sphi 0, %s58
      %s73 = sphi 0, %s59
      %s77 = sphi 0, %s77
      %s79 = sphi 0, %s77
      %s80 = sphi 0, %s79
      %s94 = sphi 0, %s80
      %s98 = sphi 0, %s98
      %s100 = sphi 0, %s98
      %s101 = sphi 0, %s100
      %s115 = sphi 0, %s101
      %s119 = sphi 0, %s119
      %s121 = sphi 0, %s119
      %s122 = sphi 0, %s121
      %s136 = sphi 0, %s122
      %s140 = sphi 0, %s140
      %s142 = sphi 0, %s140
      %s143 = sphi 0, %s142
      %s157 = sphi 0, %s143
      %s161 = sphi 0, %s161
      %s163 = sphi 0, %s161
      %s164 = sphi 0, %s163
      %s178 = sphi 0, %s164
      %s182 = sphi 0, %s182
      %s184 = sphi 0, %s182
      %s185 = sphi 0, %s184
      %s199 = sphi 0, %s185
      %s203 = sphi 0, %s203
      %s205 = sphi 0, %s203
      %s206 = sphi 0, %s205
      %s220 = sphi 0, %s206
      %s226 = sphi 0, %s228
      %s229 = sphi 0, %s226
      %s230 = sphi 0, %s229
      %s246 = sphi 0, %s230
    $region4: #{autoencoder_forward.1} parent=1 // loop_header_branch
      %25 = sbr.rel (%p23) target = $region8
    $region5: #{autoencoder_forward.1} parent=1 // loop_body
      %s27 = ssub.s32 %s22, 1
      %s28 = ssub.s32 %s22, 2
      %s29 = sadd.s32 %s22, 1
      %s30 = ssub.s32 %s22, %s29
      %p31 = scmp.eq.s32.totalorder %s30, 0
      %s33 = sadd.s32 %s32, 1
      %s34 = scalar_select %p31, %s32, %s33
      %p37 = pneg %p31
      %p38 = scmp.eq.s32.totalorder %s22, 1
      %p39 = por %p37, %p38
      %p40 = scmp.ne.s32.totalorder %s32, %s35
      %p41 = scmp.eq.s32.totalorder %s22, 0
      %p42 = por %p40, %p41
      %p43 = scmp.ne.s32.totalorder %s32, %s35
      %p44 = scmp.eq.s32.totalorder %s27, 1
      %p45 = por %p43, %p44
      %p46 = scmp.ne.s32.totalorder %s35, %s36
      %p47 = scmp.eq.s32.totalorder %s27, 0
      %p48 = por %p46, %p47
      %p49 = scmp.ne.s32.totalorder %s35, %s36
      %p50 = scmp.eq.s32.totalorder %s28, 1
      %p51 = por %p49, %p50
      %p53 = scmp.ne.s32.totalorder %s36, %s52
      %p54 = scmp.eq.s32.totalorder %s28, 0
      %p55 = por %p53, %p54
      %s57 = sadd.s32 %s56, 1
      %p60 = scmp.eq.s32.totalorder %s22, 1
      %p61 = scmp.ne.s32.totalorder %s56, %s58
      %p62 = scmp.eq.s32.totalorder %s22, 0
      %p63 = por %p61, %p62
      %p64 = scmp.ne.s32.totalorder %s56, %s58
      %p65 = scmp.eq.s32.totalorder %s27, 1
      %p66 = por %p64, %p65
      %p67 = scmp.ne.s32.totalorder %s58, %s59
      %p68 = scmp.eq.s32.totalorder %s27, 0
      %p69 = por %p67, %p68
      %p70 = scmp.ne.s32.totalorder %s58, %s59
      %p71 = scmp.eq.s32.totalorder %s28, 1
      %p72 = por %p70, %p71
      %p74 = scmp.ne.s32.totalorder %s59, %s73
      %p75 = scmp.eq.s32.totalorder %s28, 0
      %p76 = por %p74, %p75
      %s78 = sadd.s32 %s77, 1
      %p81 = scmp.eq.s32.totalorder %s22, 1
      %p82 = scmp.ne.s32.totalorder %s77, %s79
      %p83 = scmp.eq.s32.totalorder %s22, 0
      %p84 = por %p82, %p83
      %p85 = scmp.ne.s32.totalorder %s77, %s79
      %p86 = scmp.eq.s32.totalorder %s27, 1
      %p87 = por %p85, %p86
      %p88 = scmp.ne.s32.totalorder %s79, %s80
      %p89 = scmp.eq.s32.totalorder %s27, 0
      %p90 = por %p88, %p89
      %p91 = scmp.ne.s32.totalorder %s79, %s80
      %p92 = scmp.eq.s32.totalorder %s28, 1
      %p93 = por %p91, %p92
      %p95 = scmp.ne.s32.totalorder %s80, %s94
      %p96 = scmp.eq.s32.totalorder %s28, 0
      %p97 = por %p95, %p96
      %s99 = sadd.s32 %s98, 1
      %p102 = scmp.eq.s32.totalorder %s22, 1
      %p103 = scmp.ne.s32.totalorder %s98, %s100
      %p104 = scmp.eq.s32.totalorder %s22, 0
      %p105 = por %p103, %p104
      %p106 = scmp.ne.s32.totalorder %s98, %s100
      %p107 = scmp.eq.s32.totalorder %s27, 1
      %p108 = por %p106, %p107
      %p109 = scmp.ne.s32.totalorder %s100, %s101
      %p110 = scmp.eq.s32.totalorder %s27, 0
      %p111 = por %p109, %p110
      %p112 = scmp.ne.s32.totalorder %s100, %s101
      %p113 = scmp.eq.s32.totalorder %s28, 1
      %p114 = por %p112, %p113
      %p116 = scmp.ne.s32.totalorder %s101, %s115
      %p117 = scmp.eq.s32.totalorder %s28, 0
      %p118 = por %p116, %p117
      %s120 = sadd.s32 %s119, 1
      %p123 = scmp.eq.s32.totalorder %s22, 1
      %p124 = scmp.ne.s32.totalorder %s119, %s121
      %p125 = scmp.eq.s32.totalorder %s22, 0
      %p126 = por %p124, %p125
      %p127 = scmp.ne.s32.totalorder %s119, %s121
      %p128 = scmp.eq.s32.totalorder %s27, 1
      %p129 = por %p127, %p128
      %p130 = scmp.ne.s32.totalorder %s121, %s122
      %p131 = scmp.eq.s32.totalorder %s27, 0
      %p132 = por %p130, %p131
      %p133 = scmp.ne.s32.totalorder %s121, %s122
      %p134 = scmp.eq.s32.totalorder %s28, 1
      %p135 = por %p133, %p134
      %p137 = scmp.ne.s32.totalorder %s122, %s136
      %p138 = scmp.eq.s32.totalorder %s28, 0
      %p139 = por %p137, %p138
      %s141 = sadd.s32 %s140, 1
      %p144 = scmp.eq.s32.totalorder %s22, 1
      %p145 = scmp.ne.s32.totalorder %s140, %s142
      %p146 = scmp.eq.s32.totalorder %s22, 0
      %p147 = por %p145, %p146
      %p148 = scmp.ne.s32.totalorder %s140, %s142
      %p149 = scmp.eq.s32.totalorder %s27, 1
      %p150 = por %p148, %p149
      %p151 = scmp.ne.s32.totalorder %s142, %s143
      %p152 = scmp.eq.s32.totalorder %s27, 0
      %p153 = por %p151, %p152
      %p154 = scmp.ne.s32.totalorder %s142, %s143
      %p155 = scmp.eq.s32.totalorder %s28, 1
      %p156 = por %p154, %p155
      %p158 = scmp.ne.s32.totalorder %s143, %s157
      %p159 = scmp.eq.s32.totalorder %s28, 0
      %p160 = por %p158, %p159
      %s162 = sadd.s32 %s161, 1
      %p165 = scmp.eq.s32.totalorder %s22, 1
      %p166 = scmp.ne.s32.totalorder %s161, %s163
      %p167 = scmp.eq.s32.totalorder %s22, 0
      %p168 = por %p166, %p167
      %p169 = scmp.ne.s32.totalorder %s161, %s163
      %p170 = scmp.eq.s32.totalorder %s27, 1
      %p171 = por %p169, %p170
      %p172 = scmp.ne.s32.totalorder %s163, %s164
      %p173 = scmp.eq.s32.totalorder %s27, 0
      %p174 = por %p172, %p173
      %p175 = scmp.ne.s32.totalorder %s163, %s164
      %p176 = scmp.eq.s32.totalorder %s28, 1
      %p177 = por %p175, %p176
      %p179 = scmp.ne.s32.totalorder %s164, %s178
      %p180 = scmp.eq.s32.totalorder %s28, 0
      %p181 = por %p179, %p180
      %s183 = sadd.s32 %s182, 1
      %p186 = scmp.eq.s32.totalorder %s22, 1
      %p187 = scmp.ne.s32.totalorder %s182, %s184
      %p188 = scmp.eq.s32.totalorder %s22, 0
      %p189 = por %p187, %p188
      %p190 = scmp.ne.s32.totalorder %s182, %s184
      %p191 = scmp.eq.s32.totalorder %s27, 1
      %p192 = por %p190, %p191
      %p193 = scmp.ne.s32.totalorder %s184, %s185
      %p194 = scmp.eq.s32.totalorder %s27, 0
      %p195 = por %p193, %p194
      %p196 = scmp.ne.s32.totalorder %s184, %s185
      %p197 = scmp.eq.s32.totalorder %s28, 1
      %p198 = por %p196, %p197
      %p200 = scmp.ne.s32.totalorder %s185, %s199
      %p201 = scmp.eq.s32.totalorder %s28, 0
      %p202 = por %p200, %p201
      %s204 = sadd.s32 %s203, 1
      %p207 = scmp.eq.s32.totalorder %s22, 1
      %p208 = scmp.ne.s32.totalorder %s203, %s205
      %p209 = scmp.eq.s32.totalorder %s22, 0
      %p210 = por %p208, %p209
      %p211 = scmp.ne.s32.totalorder %s203, %s205
      %p212 = scmp.eq.s32.totalorder %s27, 1
      %p213 = por %p211, %p212
      %p214 = scmp.ne.s32.totalorder %s205, %s206
      %p215 = scmp.eq.s32.totalorder %s27, 0
      %p216 = por %p214, %p215
      %p217 = scmp.ne.s32.totalorder %s205, %s206
      %p218 = scmp.eq.s32.totalorder %s28, 1
      %p219 = por %p217, %p218
      %p221 = scmp.ne.s32.totalorder %s206, %s220
      %p222 = scmp.eq.s32.totalorder %s28, 0
      %p223 = por %p221, %p222
      %s224 = ssub.s32 %s22, %s29
      %p225 = scmp.eq.s32.totalorder %s224, 0
      %s227 = sadd.s32 %s226, 1
      %s228 = scalar_select %p225, %s226, %s227
      %p231 = pneg %p225
      %p232 = scmp.eq.s32.totalorder %s22, 1
      %p233 = por %p231, %p232
      %p234 = scmp.ne.s32.totalorder %s226, %s229
      %p235 = scmp.eq.s32.totalorder %s22, 0
      %p236 = por %p234, %p235
      %p237 = scmp.ne.s32.totalorder %s226, %s229
      %p238 = scmp.eq.s32.totalorder %s27, 1
      %p239 = por %p237, %p238
      %p240 = scmp.ne.s32.totalorder %s229, %s230
      %p241 = scmp.eq.s32.totalorder %s27, 0
      %p242 = por %p240, %p241
      %p243 = scmp.ne.s32.totalorder %s229, %s230
      %p244 = scmp.eq.s32.totalorder %s28, 1
      %p245 = por %p243, %p244
      %p247 = scmp.ne.s32.totalorder %s230, %s246
      %p248 = scmp.eq.s32.totalorder %s28, 0
      %p249 = por %p247, %p248
      %p250 = scmp.le.s32.totalorder 1, %s22
      %p251 = scmp.lt.s32.totalorder %s22, 3
      %p252 = pnand %p250, %p251
      %p253 = pneg %p252
      // Predicated region
      $region9: #{autoencoder_forward.1} parent=5 // pred_check
        _
      $region10: #{autoencoder_forward.1} parent=5 // pred_check_branch
        %255 = sbr.rel (%p252) target = $region12
      $region11: #{autoencoder_forward.1} parent=5 // pred_region
        %s256 = ssub.s32 %s22, 1
        // Predicated region
        $region13: #{autoencoder_forward.1} parent=11 // pred_check
          %p257 = pneg %p69
        $region14: #{autoencoder_forward.1} parent=11 // pred_check_branch
          %259 = sbr.rel (%p257) target = $region16
        $region15: #{autoencoder_forward.1} parent=11 // pred_region
          %s261 = ssub.s32 2048, 2048
          %262 = vsyncadd [#allocation6], %s261
          %s263 = sshll.u32 [#allocation5], 4
          %s264 = int_to_ptr.vmem [resolvable:$true] %s263
          %269 = dma.hbm_to_vmem [thread:$0]  %s1, 2048, %s264, [#allocation6], 64, 64, 4
        $region16: #{autoencoder_forward.1} parent=11 // pred_fallthru
          _
        // Predicated region
        $region17: #{autoencoder_forward.1} parent=11 // pred_check
          %p270 = pneg %p90
        $region18: #{autoencoder_forward.1} parent=11 // pred_check_branch
          %272 = sbr.rel (%p270) target = $region20
        $region19: #{autoencoder_forward.1} parent=11 // pred_region
          _
        $region20: #{autoencoder_forward.1} parent=11 // pred_fallthru
          _
        // Predicated region
        $region21: #{autoencoder_forward.1} parent=11 // pred_check
          %p273 = pneg %p111
        $region22: #{autoencoder_forward.1} parent=11 // pred_check_branch
          %275 = sbr.rel (%p273) target = $region24
        $region23: #{autoencoder_forward.1} parent=11 // pred_region
          _
        $region24: #{autoencoder_forward.1} parent=11 // pred_fallthru
          _
        // Predicated region
        $region25: #{autoencoder_forward.1} parent=11 // pred_check
          %p276 = pneg %p132
        $region26: #{autoencoder_forward.1} parent=11 // pred_check_branch
          %278 = sbr.rel (%p276) target = $region28
        $region27: #{autoencoder_forward.1} parent=11 // pred_region
          _
        $region28: #{autoencoder_forward.1} parent=11 // pred_fallthru
          _
        // Predicated region
        $region29: #{autoencoder_forward.1} parent=11 // pred_check
          %p279 = pneg %p153
        $region30: #{autoencoder_forward.1} parent=11 // pred_check_branch
          %281 = sbr.rel (%p279) target = $region32
        $region31: #{autoencoder_forward.1} parent=11 // pred_region
          _
        $region32: #{autoencoder_forward.1} parent=11 // pred_fallthru
          _
        // Predicated region
        $region33: #{autoencoder_forward.1} parent=11 // pred_check
          %p282 = pneg %p174
        $region34: #{autoencoder_forward.1} parent=11 // pred_check_branch
          %284 = sbr.rel (%p282) target = $region36
        $region35: #{autoencoder_forward.1} parent=11 // pred_region
          %s286 = ssub.s32 2048, 2048
          %287 = vsyncadd [#allocation6], %s286
          %s288 = sshll.u32 [#allocation7], 4
          %s289 = int_to_ptr.vmem [resolvable:$true] %s288
          %294 = dma.hbm_to_vmem [thread:$0]  %s6, 2048, %s289, [#allocation6], 128, 128, 8
        $region36: #{autoencoder_forward.1} parent=11 // pred_fallthru
          _
        // Predicated region
        $region37: #{autoencoder_forward.1} parent=11 // pred_check
          %p295 = pneg %p195
        $region38: #{autoencoder_forward.1} parent=11 // pred_check_branch
          %297 = sbr.rel (%p295) target = $region40
        $region39: #{autoencoder_forward.1} parent=11 // pred_region
          _
        $region40: #{autoencoder_forward.1} parent=11 // pred_fallthru
          _
        // Predicated region
        $region41: #{autoencoder_forward.1} parent=11 // pred_check
          %p298 = pneg %p216
        $region42: #{autoencoder_forward.1} parent=11 // pred_check_branch
          %300 = sbr.rel (%p298) target = $region44
        $region43: #{autoencoder_forward.1} parent=11 // pred_region
          _
        $region44: #{autoencoder_forward.1} parent=11 // pred_fallthru
          _
      $region12: #{autoencoder_forward.1} parent=5 // pred_fallthru
        _
      %p301 = scmp.lt.s32.totalorder %s22, 2
      // Predicated region
      $region45: #{autoencoder_forward.1} parent=5 // pred_check
        %p302 = pneg %p301
      $region46: #{autoencoder_forward.1} parent=5 // pred_check_branch
        %304 = sbr.rel (%p302) target = $region48
      $region47: #{autoencoder_forward.1} parent=5 // pred_region
        // Predicated region
        $region49: #{autoencoder_forward.1} parent=47 // pred_check
          %p305 = pneg %p42
        $region50: #{autoencoder_forward.1} parent=47 // pred_check_branch
          %307 = sbr.rel (%p305) target = $region52
        $region51: #{autoencoder_forward.1} parent=47 // pred_region
          %s308 = sand.u32 %s32, 1
          %s309 = scalar_lea.sflag [#allocation3], %s308
          %s310 = sand.u32 %s32, 1
          %s311 = smul.addr %s310, 256
          %s312 = scalar_lea.vmem [#allocation2], %s311
          %s313 = smul.u32 16, %s22
          %s315 = ssub.s32 4096, 4096
          %316 = vsyncadd %s309, %s315
          %s317 = smul.addr %s313, 2
          %s318 = smul.addr %s317, 128
          %s319 = scalar_lea.hbm %s0, %s318
          %s320 = sshll.u32 %s312, 4
          %s321 = int_to_ptr.vmem [resolvable:$true] %s320
          %326 = dma.hbm_to_vmem [thread:$0]  %s319, 4096, %s321, %s309, 256, 256, 16
        $region52: #{autoencoder_forward.1} parent=47 // pred_fallthru
          _
      $region48: #{autoencoder_forward.1} parent=5 // pred_fallthru
        _
      %p327 = scmp.le.s32.totalorder 1, %s22
      %p328 = scmp.lt.s32.totalorder %s22, 3
      %p329 = pnand %p327, %p328
      %p330 = pneg %p329
      // Predicated region
      $region53: #{autoencoder_forward.1} parent=5 // pred_check
        _
      $region54: #{autoencoder_forward.1} parent=5 // pred_check_branch
        %332 = sbr.rel (%p329) target = $region56
      $region55: #{autoencoder_forward.1} parent=5 // pred_region
        %s333 = ssub.s32 %s22, 1
        %s334 = sand.u32 %s35, 1
        %s335 = scalar_lea.sflag [#allocation3], %s334
        %s336 = sand.u32 %s35, 1
        %s337 = smul.addr %s336, 256
        %s338 = scalar_lea.vmem [#allocation2], %s337
        // Predicated region
        $region57: #{autoencoder_forward.1} parent=55 // pred_check
          %p339 = pneg %p48
        $region58: #{autoencoder_forward.1} parent=55 // pred_check_branch
          %341 = sbr.rel (%p339) target = $region60
        $region59: #{autoencoder_forward.1} parent=55 // pred_region
          %342 = dma.done %s335, 4096
        $region60: #{autoencoder_forward.1} parent=55 // pred_fallthru
          _
        // Predicated region
        $region61: #{autoencoder_forward.1} parent=55 // pred_check
          %p343 = pneg %p69
        $region62: #{autoencoder_forward.1} parent=55 // pred_check_branch
          %345 = sbr.rel (%p343) target = $region64
        $region63: #{autoencoder_forward.1} parent=55 // pred_region
          %346 = dma.done [#allocation6], 2048
        $region64: #{autoencoder_forward.1} parent=55 // pred_fallthru
          _
        // Predicated region
        $region65: #{autoencoder_forward.1} parent=55 // pred_check
          %p347 = pneg %p174
        $region66: #{autoencoder_forward.1} parent=55 // pred_check_branch
          %349 = sbr.rel (%p347) target = $region68
        $region67: #{autoencoder_forward.1} parent=55 // pred_region
          %350 = dma.done [#allocation6], 2048
        $region68: #{autoencoder_forward.1} parent=55 // pred_fallthru
          _
        %s351 = sand.u32 %s35, 1
        %s352 = scalar_lea.sflag [#allocation3], %s351
        %s353 = sand.u32 %s35, 1
        %s354 = smul.addr %s353, 256
        %s355 = scalar_lea.vmem [#allocation2], %s354
        %p356 = pneg %p48
        %p357 = pneg %p45
        %p358 = pneg %p69
        %p359 = pneg %p66
        %p360 = pneg %p90
        %p361 = pneg %p87
        %p362 = pneg %p111
        %p363 = pneg %p108
        %p364 = pneg %p132
        %p365 = pneg %p129
        %p366 = pneg %p153
        %p367 = pneg %p150
        %p368 = pneg %p174
        %p369 = pneg %p171
        %p370 = pneg %p195
        %p371 = pneg %p192
        %p372 = pneg %p216
        %p373 = pneg %p213
        %p374 = pneg %p242
        %p375 = pneg %p239
        %s376 = sand.u32 %s229, 1
        %s377 = scalar_lea.sflag [#allocation4], %s376
        %s378 = sand.u32 %s229, 1
        %s379 = smul.addr %s378, 256
        %s380 = scalar_lea.vmem [#allocation8], %s379
        %s381 = smul.u32 16, %s27
        %s382 = smul.u32 16, %s27
        %v384 = vld [vmem:[%s338] sm:$0xff]
        %v385 = vld [vmem:[%s338 + $0x8] sm:$0xff]
        %v386 = vld [vmem:[%s338 + $0x10] sm:$0xff]
        %v387 = vld [vmem:[%s338 + $0x18] sm:$0xff]
        %v388 = vld [vmem:[%s338 + $0x20] sm:$0xff]
        %v389 = vld [vmem:[%s338 + $0x28] sm:$0xff]
        %v390 = vld [vmem:[%s338 + $0x30] sm:$0xff]
        %v391 = vld [vmem:[%s338 + $0x38] sm:$0xff]
        %v392 = vld [vmem:[%s338 + $0x40] sm:$0xff]
        %v393 = vld [vmem:[%s338 + $0x48] sm:$0xff]
        %v394 = vld [vmem:[%s338 + $0x50] sm:$0xff]
        %v395 = vld [vmem:[%s338 + $0x58] sm:$0xff]
        %v396 = vld [vmem:[%s338 + $0x60] sm:$0xff]
        %v397 = vld [vmem:[%s338 + $0x68] sm:$0xff]
        %v398 = vld [vmem:[%s338 + $0x70] sm:$0xff]
        %v399 = vld [vmem:[%s338 + $0x78] sm:$0xff]
        %v400 = vld [vmem:[%s338 + $0x80] sm:$0xff]
        %v401 = vld [vmem:[%s338 + $0x88] sm:$0xff]
        %v402 = vld [vmem:[%s338 + $0x90] sm:$0xff]
        %v403 = vld [vmem:[%s338 + $0x98] sm:$0xff]
        %v404 = vld [vmem:[%s338 + $0xa0] sm:$0xff]
        %v405 = vld [vmem:[%s338 + $0xa8] sm:$0xff]
        %v406 = vld [vmem:[%s338 + $0xb0] sm:$0xff]
        %v407 = vld [vmem:[%s338 + $0xb8] sm:$0xff]
        %v408 = vld [vmem:[%s338 + $0xc0] sm:$0xff]
        %v409 = vld [vmem:[%s338 + $0xc8] sm:$0xff]
        %v410 = vld [vmem:[%s338 + $0xd0] sm:$0xff]
        %v411 = vld [vmem:[%s338 + $0xd8] sm:$0xff]
        %v412 = vld [vmem:[%s338 + $0xe0] sm:$0xff]
        %v413 = vld [vmem:[%s338 + $0xe8] sm:$0xff]
        %v414 = vld [vmem:[%s338 + $0xf0] sm:$0xff]
        %v415 = vld [vmem:[%s338 + $0xf8] sm:$0xff]
        %v416 = vpack.c.bf16 %v386, %v384
        %v417 = vpack.c.bf16 %v387, %v385
        %v418 = vpack.c.bf16 %v390, %v388
        %v419 = vpack.c.bf16 %v391, %v389
        %v420 = vpack.c.bf16 %v394, %v392
        %v421 = vpack.c.bf16 %v395, %v393
        %v422 = vpack.c.bf16 %v398, %v396
        %v423 = vpack.c.bf16 %v399, %v397
        %v424 = vpack.c.bf16 %v402, %v400
        %v425 = vpack.c.bf16 %v403, %v401
        %v426 = vpack.c.bf16 %v406, %v404
        %v427 = vpack.c.bf16 %v407, %v405
        %v428 = vpack.c.bf16 %v410, %v408
        %v429 = vpack.c.bf16 %v411, %v409
        %v430 = vpack.c.bf16 %v414, %v412
        %v431 = vpack.c.bf16 %v415, %v413
        %v432 = vld [vmem:[#allocation5] sm:$0xf]
        %v433 = vld [vmem:[#allocation5 + $0x4] sm:$0xf]
        %v434 = vld [vmem:[#allocation5 + $0x8] sm:$0xf]
        %v435 = vld [vmem:[#allocation5 + $0xc] sm:$0xf]
        %v436 = vld [vmem:[#allocation5 + $0x10] sm:$0xf]
        %v437 = vld [vmem:[#allocation5 + $0x14] sm:$0xf]
        %v438 = vld [vmem:[#allocation5 + $0x18] sm:$0xf]
        %v439 = vld [vmem:[#allocation5 + $0x1c] sm:$0xf]
        %v440 = vld [vmem:[#allocation5 + $0x20] sm:$0xf]
        %v441 = vld [vmem:[#allocation5 + $0x24] sm:$0xf]
        %v442 = vld [vmem:[#allocation5 + $0x28] sm:$0xf]
        %v443 = vld [vmem:[#allocation5 + $0x2c] sm:$0xf]
        %v444 = vld [vmem:[#allocation5 + $0x30] sm:$0xf]
        %v445 = vld [vmem:[#allocation5 + $0x34] sm:$0xf]
        %v446 = vld [vmem:[#allocation5 + $0x38] sm:$0xf]
        %v447 = vld [vmem:[#allocation5 + $0x3c] sm:$0xf]
        %v448 = vld [vmem:[#allocation5 + $0x40] sm:$0xf]
        %v449 = vld [vmem:[#allocation5 + $0x44] sm:$0xf]
        %v450 = vld [vmem:[#allocation5 + $0x48] sm:$0xf]
        %v451 = vld [vmem:[#allocation5 + $0x4c] sm:$0xf]
        %v452 = vld [vmem:[#allocation5 + $0x50] sm:$0xf]
        %v453 = vld [vmem:[#allocation5 + $0x54] sm:$0xf]
        %v454 = vld [vmem:[#allocation5 + $0x58] sm:$0xf]
        %v455 = vld [vmem:[#allocation5 + $0x5c] sm:$0xf]
        %v456 = vld [vmem:[#allocation5 + $0x60] sm:$0xf]
        %v457 = vld [vmem:[#allocation5 + $0x64] sm:$0xf]
        %v458 = vld [vmem:[#allocation5 + $0x68] sm:$0xf]
        %v459 = vld [vmem:[#allocation5 + $0x6c] sm:$0xf]
        %v460 = vld [vmem:[#allocation5 + $0x70] sm:$0xf]
        %v461 = vld [vmem:[#allocation5 + $0x74] sm:$0xf]
        %v462 = vld [vmem:[#allocation5 + $0x78] sm:$0xf]
        %v463 = vld [vmem:[#allocation5 + $0x7c] sm:$0xf]
        %v464 = vld [vmem:[%s3] sm:$0x1]
        %v466 = vlaneseq
        %v467 = vshrl.u32 %v466, 7
        %v468 = vsub.s32 0, %v467
        %v469 = vrot.slane %v464, %v468
        %v503 = vunpack.c.l.b16 %v432
        %v504 = vunpack.c.l.b16 %v433
        %v505 = vunpack.c.l.b16 %v434
        %v506 = vunpack.c.l.b16 %v435
        %v507 = vunpack.c.l.b16 %v436
        %v508 = vunpack.c.l.b16 %v437
        %v509 = vunpack.c.l.b16 %v438
        %v510 = vunpack.c.l.b16 %v439
        %v511 = vunpack.c.l.b16 %v440
        %v512 = vunpack.c.l.b16 %v441
        %v513 = vunpack.c.l.b16 %v442
        %v514 = vunpack.c.l.b16 %v443
        %v515 = vunpack.c.l.b16 %v444
        %v516 = vunpack.c.l.b16 %v445
        %v517 = vunpack.c.l.b16 %v446
        %v518 = vunpack.c.l.b16 %v447
        %v519 = vunpack.c.l.b16 %v448
        %v520 = vunpack.c.l.b16 %v449
        %v521 = vunpack.c.l.b16 %v450
        %v522 = vunpack.c.l.b16 %v451
        %v523 = vunpack.c.l.b16 %v452
        %v524 = vunpack.c.l.b16 %v453
        %v525 = vunpack.c.l.b16 %v454
        %v526 = vunpack.c.l.b16 %v455
        %v527 = vunpack.c.l.b16 %v456
        %v528 = vunpack.c.l.b16 %v457
        %v529 = vunpack.c.l.b16 %v458
        %v530 = vunpack.c.l.b16 %v459
        %v531 = vunpack.c.l.b16 %v460
        %v532 = vunpack.c.l.b16 %v461
        %v533 = vunpack.c.l.b16 %v462
        %v534 = vunpack.c.l.b16 %v463
        %v535 = vpack.c.b16 %v504, %v503
        %v536 = vpack.c.b16 %v506, %v505
        %v537 = vpack.c.b16 %v508, %v507
        %v538 = vpack.c.b16 %v510, %v509
        %v539 = vpack.c.b16 %v512, %v511
        %v540 = vpack.c.b16 %v514, %v513
        %v541 = vpack.c.b16 %v516, %v515
        %v542 = vpack.c.b16 %v518, %v517
        %v543 = vpack.c.b16 %v520, %v519
        %v544 = vpack.c.b16 %v522, %v521
        %v545 = vpack.c.b16 %v524, %v523
        %v546 = vpack.c.b16 %v526, %v525
        %v547 = vpack.c.b16 %v528, %v527
        %v548 = vpack.c.b16 %v530, %v529
        %v549 = vpack.c.b16 %v532, %v531
        %v550 = vpack.c.b16 %v534, %v533
        %567 = vmatprep.subr.bf16.mxu0 0
        %568 = vmatpush1.bf16.msra.mxu0 %v542
        %569 = vmatprep.subr.bf16.mxu0 0
        %570 = vmatpush1.bf16.msra.mxu0 %v541
        %571 = vmatprep.subr.bf16.mxu0 0
        %572 = vmatpush1.bf16.msra.mxu0 %v540
        %573 = vmatprep.subr.bf16.mxu0 0
        %574 = vmatpush1.bf16.msra.mxu0 %v539
        %575 = vmatprep.subr.bf16.mxu0 0
        %576 = vmatpush1.bf16.msra.mxu0 %v538
        %577 = vmatprep.subr.bf16.mxu0 0
        %578 = vmatpush1.bf16.msra.mxu0 %v537
        %579 = vmatprep.subr.bf16.mxu0 0
        %580 = vmatpush1.bf16.msra.mxu0 %v536
        %581 = vmatprep.subr.bf16.mxu0 0
        %582 = vmatpush1.bf16.msra.mxu0 %v535
        %583 = vmatprep.subr.bf16.mxu0 0
        %584 = vmatpush2.bf16.msra.mxu0 %v550
        %585 = vmatprep.subr.bf16.mxu0 0
        %586 = vmatpush2.bf16.msra.mxu0 %v549
        %587 = vmatprep.subr.bf16.mxu0 0
        %588 = vmatpush2.bf16.msra.mxu0 %v548
        %589 = vmatprep.subr.bf16.mxu0 0
        %590 = vmatpush2.bf16.msra.mxu0 %v547
        %591 = vmatprep.subr.bf16.mxu0 0
        %592 = vmatpush2.bf16.msra.mxu0 %v546
        %593 = vmatprep.subr.bf16.mxu0 0
        %594 = vmatpush2.bf16.msra.mxu0 %v545
        %595 = vmatprep.subr.bf16.mxu0 0
        %596 = vmatpush2.bf16.msra.mxu0 %v544
        %597 = vmatprep.subr.bf16.mxu0 0
        %598 = vmatpush2.bf16.msra.mxu0 %v543
        %599 = vmatprep.mubr.bf16.mxu0 %v417
        %600 = vmatmul.mubr.bf16.gmra.mxu0 %v416
        %v601 = vpop.f32.mrf.mxu0
        %v602 = vadd.f32 %v469, %v601
        %v603 = vpop.f32.mrf.mxu0
        %v604 = vpop.f32.mrf.mxu0
        %v605 = vadd.f32 %v469, %v604
        %v606 = vpop.f32.mrf.mxu0
        %607 = vmatprep.mubr.bf16.mxu0 %v419
        %608 = vmatmul.mubr.bf16.gmra.mxu0 %v418
        %v609 = vpop.f32.mrf.mxu0
        %v610 = vadd.f32 %v469, %v609
        %v611 = vpop.f32.mrf.mxu0
        %v612 = vpop.f32.mrf.mxu0
        %v613 = vadd.f32 %v469, %v612
        %v614 = vpop.f32.mrf.mxu0
        %615 = vmatprep.mubr.bf16.mxu0 %v421
        %616 = vmatmul.mubr.bf16.gmra.mxu0 %v420
        %v617 = vpop.f32.mrf.mxu0
        %v618 = vadd.f32 %v469, %v617
        %v619 = vpop.f32.mrf.mxu0
        %v620 = vpop.f32.mrf.mxu0
        %v621 = vadd.f32 %v469, %v620
        %v622 = vpop.f32.mrf.mxu0
        %623 = vmatprep.mubr.bf16.mxu0 %v423
        %624 = vmatmul.mubr.bf16.gmra.mxu0 %v422
        %v625 = vpop.f32.mrf.mxu0
        %v626 = vadd.f32 %v469, %v625
        %v627 = vpop.f32.mrf.mxu0
        %v628 = vpop.f32.mrf.mxu0
        %v629 = vadd.f32 %v469, %v628
        %v630 = vpop.f32.mrf.mxu0
        %631 = vmatprep.mubr.bf16.mxu0 %v425
        %632 = vmatmul.mubr.bf16.gmra.mxu0 %v424
        %v633 = vpop.f32.mrf.mxu0
        %v634 = vadd.f32 %v469, %v633
        %v635 = vpop.f32.mrf.mxu0
        %v636 = vpop.f32.mrf.mxu0
        %v637 = vadd.f32 %v469, %v636
        %v638 = vpop.f32.mrf.mxu0
        %639 = vmatprep.mubr.bf16.mxu0 %v427
        %640 = vmatmul.mubr.bf16.gmra.mxu0 %v426
        %v641 = vpop.f32.mrf.mxu0
        %v642 = vadd.f32 %v469, %v641
        %v643 = vpop.f32.mrf.mxu0
        %v644 = vpop.f32.mrf.mxu0
        %v645 = vadd.f32 %v469, %v644
        %v646 = vpop.f32.mrf.mxu0
        %647 = vmatprep.mubr.bf16.mxu0 %v429
        %648 = vmatmul.mubr.bf16.gmra.mxu0 %v428
        %v649 = vpop.f32.mrf.mxu0
        %v650 = vadd.f32 %v469, %v649
        %v651 = vpop.f32.mrf.mxu0
        %v652 = vpop.f32.mrf.mxu0
        %v653 = vadd.f32 %v469, %v652
        %v654 = vpop.f32.mrf.mxu0
        %655 = vmatprep.mubr.bf16.mxu0 %v431
        %656 = vmatmul.mubr.bf16.gmra.mxu0 %v430
        %v657 = vpop.f32.mrf.mxu0
        %v658 = vadd.f32 %v469, %v657
        %v659 = vpop.f32.mrf.mxu0
        %v660 = vpop.f32.mrf.mxu0
        %v661 = vadd.f32 %v469, %v660
        %v662 = vpop.f32.mrf.mxu0
        %663 = vdwg.mxu0
        %vm664 = vcmp.gt.f32.partialorder %v602, 0.0
        %vm665 = vcmp.gt.f32.partialorder %v605, 0.0
        %vm666 = vcmp.gt.f32.partialorder %v610, 0.0
        %vm667 = vcmp.gt.f32.partialorder %v613, 0.0
        %vm668 = vcmp.gt.f32.partialorder %v618, 0.0
        %vm669 = vcmp.gt.f32.partialorder %v621, 0.0
        %vm670 = vcmp.gt.f32.partialorder %v626, 0.0
        %vm671 = vcmp.gt.f32.partialorder %v629, 0.0
        %vm672 = vcmp.gt.f32.partialorder %v634, 0.0
        %vm673 = vcmp.gt.f32.partialorder %v637, 0.0
        %vm674 = vcmp.gt.f32.partialorder %v642, 0.0
        %vm675 = vcmp.gt.f32.partialorder %v645, 0.0
        %vm676 = vcmp.gt.f32.partialorder %v650, 0.0
        %vm677 = vcmp.gt.f32.partialorder %v653, 0.0
        %vm678 = vcmp.gt.f32.partialorder %v658, 0.0
        %vm679 = vcmp.gt.f32.partialorder %v661, 0.0
        %v680 = vand.u32 2147483647, %v602
        %v681 = vand.u32 2147483647, %v605
        %v682 = vand.u32 2147483647, %v610
        %v683 = vand.u32 2147483647, %v613
        %v684 = vand.u32 2147483647, %v618
        %v685 = vand.u32 2147483647, %v621
        %v686 = vand.u32 2147483647, %v626
        %v687 = vand.u32 2147483647, %v629
        %v688 = vand.u32 2147483647, %v634
        %v689 = vand.u32 2147483647, %v637
        %v690 = vand.u32 2147483647, %v642
        %v691 = vand.u32 2147483647, %v645
        %v692 = vand.u32 2147483647, %v650
        %v693 = vand.u32 2147483647, %v653
        %v694 = vand.u32 2147483647, %v658
        %v695 = vand.u32 2147483647, %v661
        %vm696 = vcmp.lt.f32.partialorder %v680, 0.001
        %vm697 = vcmp.lt.f32.partialorder %v681, 0.001
        %vm698 = vcmp.lt.f32.partialorder %v682, 0.001
        %vm699 = vcmp.lt.f32.partialorder %v683, 0.001
        %vm700 = vcmp.lt.f32.partialorder %v684, 0.001
        %vm701 = vcmp.lt.f32.partialorder %v685, 0.001
        %vm702 = vcmp.lt.f32.partialorder %v686, 0.001
        %vm703 = vcmp.lt.f32.partialorder %v687, 0.001
        %vm704 = vcmp.lt.f32.partialorder %v688, 0.001
        %vm705 = vcmp.lt.f32.partialorder %v689, 0.001
        %vm706 = vcmp.lt.f32.partialorder %v690, 0.001
        %vm707 = vcmp.lt.f32.partialorder %v691, 0.001
        %vm708 = vcmp.lt.f32.partialorder %v692, 0.001
        %vm709 = vcmp.lt.f32.partialorder %v693, 0.001
        %vm710 = vcmp.lt.f32.partialorder %v694, 0.001
        %vm711 = vcmp.lt.f32.partialorder %v695, 0.001
        %v712 = vmul.f32 %v602, 0.5
        %v713 = vmul.f32 %v605, 0.5
        %v714 = vmul.f32 %v610, 0.5
        %v715 = vmul.f32 %v613, 0.5
        %v716 = vmul.f32 %v618, 0.5
        %v717 = vmul.f32 %v621, 0.5
        %v718 = vmul.f32 %v626, 0.5
        %v719 = vmul.f32 %v629, 0.5
        %v720 = vmul.f32 %v634, 0.5
        %v721 = vmul.f32 %v637, 0.5
        %v722 = vmul.f32 %v642, 0.5
        %v723 = vmul.f32 %v645, 0.5
        %v724 = vmul.f32 %v650, 0.5
        %v725 = vmul.f32 %v653, 0.5
        %v726 = vmul.f32 %v658, 0.5
        %v727 = vmul.f32 %v661, 0.5
        %v728 = vadd.f32 %v712, 1.0
        %v729 = vadd.f32 %v713, 1.0
        %v730 = vadd.f32 %v714, 1.0
        %v731 = vadd.f32 %v715, 1.0
        %v732 = vadd.f32 %v716, 1.0
        %v733 = vadd.f32 %v717, 1.0
        %v734 = vadd.f32 %v718, 1.0
        %v735 = vadd.f32 %v719, 1.0
        %v736 = vadd.f32 %v720, 1.0
        %v737 = vadd.f32 %v721, 1.0
        %v738 = vadd.f32 %v722, 1.0
        %v739 = vadd.f32 %v723, 1.0
        %v740 = vadd.f32 %v724, 1.0
        %v741 = vadd.f32 %v725, 1.0
        %v742 = vadd.f32 %v726, 1.0
        %v743 = vadd.f32 %v727, 1.0
        %v744 = vmul.f32 %v602, %v728
        %v745 = vmul.f32 %v605, %v729
        %v746 = vmul.f32 %v610, %v730
        %v747 = vmul.f32 %v613, %v731
        %v748 = vmul.f32 %v618, %v732
        %v749 = vmul.f32 %v621, %v733
        %v750 = vmul.f32 %v626, %v734
        %v751 = vmul.f32 %v629, %v735
        %v752 = vmul.f32 %v634, %v736
        %v753 = vmul.f32 %v637, %v737
        %v754 = vmul.f32 %v642, %v738
        %v755 = vmul.f32 %v645, %v739
        %v756 = vmul.f32 %v650, %v740
        %v757 = vmul.f32 %v653, %v741
        %v758 = vmul.f32 %v658, %v742
        %v759 = vmul.f32 %v661, %v743
        %v760 = vmul.f32 %v602, 1.442695
        %v761 = vpow.pop %v760
        %v762 = vmul.f32 %v605, 1.442695
        %v763 = vpow.pop %v762
        %v764 = vmul.f32 %v610, 1.442695
        %v765 = vpow.pop %v764
        %v766 = vmul.f32 %v613, 1.442695
        %v767 = vpow.pop %v766
        %v768 = vmul.f32 %v618, 1.442695
        %v769 = vpow.pop %v768
        %v770 = vmul.f32 %v621, 1.442695
        %v771 = vpow.pop %v770
        %v772 = vmul.f32 %v626, 1.442695
        %v773 = vpow.pop %v772
        %v774 = vmul.f32 %v629, 1.442695
        %v775 = vpow.pop %v774
        %v776 = vmul.f32 %v634, 1.442695
        %v777 = vpow.pop %v776
        %v778 = vmul.f32 %v637, 1.442695
        %v779 = vpow.pop %v778
        %v780 = vmul.f32 %v642, 1.442695
        %v781 = vpow.pop %v780
        %v782 = vmul.f32 %v645, 1.442695
        %v783 = vpow.pop %v782
        %v784 = vmul.f32 %v650, 1.442695
        %v785 = vpow.pop %v784
        %v786 = vmul.f32 %v653, 1.442695
        %v787 = vpow.pop %v786
        %v788 = vmul.f32 %v658, 1.442695
        %v789 = vpow.pop %v788
        %v790 = vmul.f32 %v661, 1.442695
        %v791 = vpow.pop %v790
        %v792 = vsub.f32 %v761, 1.0
        %v793 = vsub.f32 %v763, 1.0
        %v794 = vsub.f32 %v765, 1.0
        %v795 = vsub.f32 %v767, 1.0
        %v796 = vsub.f32 %v769, 1.0
        %v797 = vsub.f32 %v771, 1.0
        %v798 = vsub.f32 %v773, 1.0
        %v799 = vsub.f32 %v775, 1.0
        %v800 = vsub.f32 %v777, 1.0
        %v801 = vsub.f32 %v779, 1.0
        %v802 = vsub.f32 %v781, 1.0
        %v803 = vsub.f32 %v783, 1.0
        %v804 = vsub.f32 %v785, 1.0
        %v805 = vsub.f32 %v787, 1.0
        %v806 = vsub.f32 %v789, 1.0
        %v807 = vsub.f32 %v791, 1.0
        %v808 = vsel %vm696, %v744, %v792
        %v809 = vsel %vm697, %v745, %v793
        %v810 = vsel %vm698, %v746, %v794
        %v811 = vsel %vm699, %v747, %v795
        %v812 = vsel %vm700, %v748, %v796
        %v813 = vsel %vm701, %v749, %v797
        %v814 = vsel %vm702, %v750, %v798
        %v815 = vsel %vm703, %v751, %v799
        %v816 = vsel %vm704, %v752, %v800
        %v817 = vsel %vm705, %v753, %v801
        %v818 = vsel %vm706, %v754, %v802
        %v819 = vsel %vm707, %v755, %v803
        %v820 = vsel %vm708, %v756, %v804
        %v821 = vsel %vm709, %v757, %v805
        %v822 = vsel %vm710, %v758, %v806
        %v823 = vsel %vm711, %v759, %v807
        %v824 = vmul.f32 %v808, 1.6732632
        %v825 = vmul.f32 %v809, 1.6732632
        %v826 = vmul.f32 %v810, 1.6732632
        %v827 = vmul.f32 %v811, 1.6732632
        %v828 = vmul.f32 %v812, 1.6732632
        %v829 = vmul.f32 %v813, 1.6732632
        %v830 = vmul.f32 %v814, 1.6732632
        %v831 = vmul.f32 %v815, 1.6732632
        %v832 = vmul.f32 %v816, 1.6732632
        %v833 = vmul.f32 %v817, 1.6732632
        %v834 = vmul.f32 %v818, 1.6732632
        %v835 = vmul.f32 %v819, 1.6732632
        %v836 = vmul.f32 %v820, 1.6732632
        %v837 = vmul.f32 %v821, 1.6732632
        %v838 = vmul.f32 %v822, 1.6732632
        %v839 = vmul.f32 %v823, 1.6732632
        %v840 = vsel %vm664, %v602, %v824
        %v841 = vsel %vm665, %v605, %v825
        %v842 = vsel %vm666, %v610, %v826
        %v843 = vsel %vm667, %v613, %v827
        %v844 = vsel %vm668, %v618, %v828
        %v845 = vsel %vm669, %v621, %v829
        %v846 = vsel %vm670, %v626, %v830
        %v847 = vsel %vm671, %v629, %v831
        %v848 = vsel %vm672, %v634, %v832
        %v849 = vsel %vm673, %v637, %v833
        %v850 = vsel %vm674, %v642, %v834
        %v851 = vsel %vm675, %v645, %v835
        %v852 = vsel %vm676, %v650, %v836
        %v853 = vsel %vm677, %v653, %v837
        %v854 = vsel %vm678, %v658, %v838
        %v855 = vsel %vm679, %v661, %v839
        %v856 = vmul.f32 %v840, 1.050701
        %v857 = vmul.f32 %v841, 1.050701
        %v858 = vmul.f32 %v842, 1.050701
        %v859 = vmul.f32 %v843, 1.050701
        %v860 = vmul.f32 %v844, 1.050701
        %v861 = vmul.f32 %v845, 1.050701
        %v862 = vmul.f32 %v846, 1.050701
        %v863 = vmul.f32 %v847, 1.050701
        %v864 = vmul.f32 %v848, 1.050701
        %v865 = vmul.f32 %v849, 1.050701
        %v866 = vmul.f32 %v850, 1.050701
        %v867 = vmul.f32 %v851, 1.050701
        %v868 = vmul.f32 %v852, 1.050701
        %v869 = vmul.f32 %v853, 1.050701
        %v870 = vmul.f32 %v854, 1.050701
        %v871 = vmul.f32 %v855, 1.050701
        %v872 = vpack.c.bf16 %v857, %v856
        %v873 = vpack.c.bf16 %v859, %v858
        %v874 = vpack.c.bf16 %v861, %v860
        %v875 = vpack.c.bf16 %v863, %v862
        %v876 = vpack.c.bf16 %v865, %v864
        %v877 = vpack.c.bf16 %v867, %v866
        %v878 = vpack.c.bf16 %v869, %v868
        %v879 = vpack.c.bf16 %v871, %v870
        %v880 = vld [vmem:[%s2] sm:$0xf]
        %v881 = vld [vmem:[%s2 + $0x4] sm:$0xf]
        %v882 = vld [vmem:[%s2 + $0x8] sm:$0xf]
        %v883 = vld [vmem:[%s2 + $0xc] sm:$0xf]
        %v884 = vld [vmem:[%s2 + $0x10] sm:$0xf]
        %v885 = vld [vmem:[%s2 + $0x14] sm:$0xf]
        %v886 = vld [vmem:[%s2 + $0x18] sm:$0xf]
        %v887 = vld [vmem:[%s2 + $0x1c] sm:$0xf]
        %v888 = vld [vmem:[%s2 + $0x20] sm:$0xf]
        %v889 = vld [vmem:[%s2 + $0x24] sm:$0xf]
        %v890 = vld [vmem:[%s2 + $0x28] sm:$0xf]
        %v891 = vld [vmem:[%s2 + $0x2c] sm:$0xf]
        %v892 = vld [vmem:[%s2 + $0x30] sm:$0xf]
        %v893 = vld [vmem:[%s2 + $0x34] sm:$0xf]
        %v894 = vld [vmem:[%s2 + $0x38] sm:$0xf]
        %v895 = vld [vmem:[%s2 + $0x3c] sm:$0xf]
        %v896 = vld [vmem:[%s4] sm:$0x1]
        %v898 = vlaneseq
        %v899 = vshrl.u32 %v898, 7
        %v900 = vsub.s32 0, %v899
        %v901 = vrot.slane %v896, %v900
        %v919 = vunpack.c.l.b16 %v880
        %v920 = vunpack.c.l.b16 %v881
        %v921 = vunpack.c.l.b16 %v882
        %v922 = vunpack.c.l.b16 %v883
        %v923 = vunpack.c.l.b16 %v884
        %v924 = vunpack.c.l.b16 %v885
        %v925 = vunpack.c.l.b16 %v886
        %v926 = vunpack.c.l.b16 %v887
        %v927 = vunpack.c.l.b16 %v888
        %v928 = vunpack.c.l.b16 %v889
        %v929 = vunpack.c.l.b16 %v890
        %v930 = vunpack.c.l.b16 %v891
        %v931 = vunpack.c.l.b16 %v892
        %v932 = vunpack.c.l.b16 %v893
        %v933 = vunpack.c.l.b16 %v894
        %v934 = vunpack.c.l.b16 %v895
        %v935 = vpack.c.b16 %v920, %v919
        %v936 = vpack.c.b16 %v922, %v921
        %v937 = vpack.c.b16 %v924, %v923
        %v938 = vpack.c.b16 %v926, %v925
        %v939 = vpack.c.b16 %v928, %v927
        %v940 = vpack.c.b16 %v930, %v929
        %v941 = vpack.c.b16 %v932, %v931
        %v942 = vpack.c.b16 %v934, %v933
        %951 = vmatprep.subr.bf16.mxu0 0
        %952 = vmatpush1.bf16.msra.mxu0 %v942
        %953 = vmatprep.subr.bf16.mxu0 0
        %954 = vmatpush1.bf16.msra.mxu0 %v941
        %955 = vmatprep.subr.bf16.mxu0 0
        %956 = vmatpush1.bf16.msra.mxu0 %v940
        %957 = vmatprep.subr.bf16.mxu0 0
        %958 = vmatpush1.bf16.msra.mxu0 %v939
        %959 = vmatprep.subr.bf16.mxu0 0
        %960 = vmatpush1.bf16.msra.mxu0 %v938
        %961 = vmatprep.subr.bf16.mxu0 0
        %962 = vmatpush1.bf16.msra.mxu0 %v937
        %963 = vmatprep.subr.bf16.mxu0 0
        %964 = vmatpush1.bf16.msra.mxu0 %v936
        %965 = vmatprep.subr.bf16.mxu0 0
        %966 = vmatpush1.bf16.msra.mxu0 %v935
        %967 = vmatprep.subr.bf16.mxu0 0
        %968 = vmatpush2.bf16.msra.mxu0 0
        %969 = vmatprep.subr.bf16.mxu0 0
        %970 = vmatpush2.bf16.msra.mxu0 0
        %971 = vmatprep.subr.bf16.mxu0 0
        %972 = vmatpush2.bf16.msra.mxu0 0
        %973 = vmatprep.subr.bf16.mxu0 0
        %974 = vmatpush2.bf16.msra.mxu0 0
        %975 = vmatprep.subr.bf16.mxu0 0
        %976 = vmatpush2.bf16.msra.mxu0 0
        %977 = vmatprep.subr.bf16.mxu0 0
        %978 = vmatpush2.bf16.msra.mxu0 0
        %979 = vmatprep.subr.bf16.mxu0 0
        %980 = vmatpush2.bf16.msra.mxu0 0
        %981 = vmatprep.subr.bf16.mxu0 0
        %982 = vmatpush2.bf16.msra.mxu0 0
        %983 = vmatprep.mubr.bf16.mxu0 0
        %984 = vmatmul.mubr.bf16.gmra.mxu0 %v872
        %v985 = vpop.f32.mrf.mxu0
        %v986 = vadd.f32 %v901, %v985
        %v987 = vpop.f32.mrf.mxu0
        %v988 = vpop.f32.mrf.mxu0
        %v989 = vadd.f32 %v901, %v988
        %v990 = vpop.f32.mrf.mxu0
        %991 = vmatprep.mubr.bf16.mxu0 0
        %992 = vmatmul.mubr.bf16.gmra.mxu0 %v873
        %v993 = vpop.f32.mrf.mxu0
        %v994 = vadd.f32 %v901, %v993
        %v995 = vpop.f32.mrf.mxu0
        %v996 = vpop.f32.mrf.mxu0
        %v997 = vadd.f32 %v901, %v996
        %v998 = vpop.f32.mrf.mxu0
        %999 = vmatprep.mubr.bf16.mxu0 0
        %1000 = vmatmul.mubr.bf16.gmra.mxu0 %v874
        %v1001 = vpop.f32.mrf.mxu0
        %v1002 = vadd.f32 %v901, %v1001
        %v1003 = vpop.f32.mrf.mxu0
        %v1004 = vpop.f32.mrf.mxu0
        %v1005 = vadd.f32 %v901, %v1004
        %v1006 = vpop.f32.mrf.mxu0
        %1007 = vmatprep.mubr.bf16.mxu0 0
        %1008 = vmatmul.mubr.bf16.gmra.mxu0 %v875
        %v1009 = vpop.f32.mrf.mxu0
        %v1010 = vadd.f32 %v901, %v1009
        %v1011 = vpop.f32.mrf.mxu0
        %v1012 = vpop.f32.mrf.mxu0
        %v1013 = vadd.f32 %v901, %v1012
        %v1014 = vpop.f32.mrf.mxu0
        %1015 = vmatprep.mubr.bf16.mxu0 0
        %1016 = vmatmul.mubr.bf16.gmra.mxu0 %v876
        %v1017 = vpop.f32.mrf.mxu0
        %v1018 = vadd.f32 %v901, %v1017
        %v1019 = vpop.f32.mrf.mxu0
        %v1020 = vpop.f32.mrf.mxu0
        %v1021 = vadd.f32 %v901, %v1020
        %v1022 = vpop.f32.mrf.mxu0
        %1023 = vmatprep.mubr.bf16.mxu0 0
        %1024 = vmatmul.mubr.bf16.gmra.mxu0 %v877
        %v1025 = vpop.f32.mrf.mxu0
        %v1026 = vadd.f32 %v901, %v1025
        %v1027 = vpop.f32.mrf.mxu0
        %v1028 = vpop.f32.mrf.mxu0
        %v1029 = vadd.f32 %v901, %v1028
        %v1030 = vpop.f32.mrf.mxu0
        %1031 = vmatprep.mubr.bf16.mxu0 0
        %1032 = vmatmul.mubr.bf16.gmra.mxu0 %v878
        %v1033 = vpop.f32.mrf.mxu0
        %v1034 = vadd.f32 %v901, %v1033
        %v1035 = vpop.f32.mrf.mxu0
        %v1036 = vpop.f32.mrf.mxu0
        %v1037 = vadd.f32 %v901, %v1036
        %v1038 = vpop.f32.mrf.mxu0
        %1039 = vmatprep.mubr.bf16.mxu0 0
        %1040 = vmatmul.mubr.bf16.gmra.mxu0 %v879
        %v1041 = vpop.f32.mrf.mxu0
        %v1042 = vadd.f32 %v901, %v1041
        %v1043 = vpop.f32.mrf.mxu0
        %v1044 = vpop.f32.mrf.mxu0
        %v1045 = vadd.f32 %v901, %v1044
        %v1046 = vpop.f32.mrf.mxu0
        %1047 = vdwg.mxu0
        %vm1048 = vcmp.gt.f32.partialorder %v986, 0.0
        %vm1049 = vcmp.gt.f32.partialorder %v989, 0.0
        %vm1050 = vcmp.gt.f32.partialorder %v994, 0.0
        %vm1051 = vcmp.gt.f32.partialorder %v997, 0.0
        %vm1052 = vcmp.gt.f32.partialorder %v1002, 0.0
        %vm1053 = vcmp.gt.f32.partialorder %v1005, 0.0
        %vm1054 = vcmp.gt.f32.partialorder %v1010, 0.0
        %vm1055 = vcmp.gt.f32.partialorder %v1013, 0.0
        %vm1056 = vcmp.gt.f32.partialorder %v1018, 0.0
        %vm1057 = vcmp.gt.f32.partialorder %v1021, 0.0
        %vm1058 = vcmp.gt.f32.partialorder %v1026, 0.0
        %vm1059 = vcmp.gt.f32.partialorder %v1029, 0.0
        %vm1060 = vcmp.gt.f32.partialorder %v1034, 0.0
        %vm1061 = vcmp.gt.f32.partialorder %v1037, 0.0
        %vm1062 = vcmp.gt.f32.partialorder %v1042, 0.0
        %vm1063 = vcmp.gt.f32.partialorder %v1045, 0.0
        %v1064 = vand.u32 2147483647, %v986
        %v1065 = vand.u32 2147483647, %v989
        %v1066 = vand.u32 2147483647, %v994
        %v1067 = vand.u32 2147483647, %v997
        %v1068 = vand.u32 2147483647, %v1002
        %v1069 = vand.u32 2147483647, %v1005
        %v1070 = vand.u32 2147483647, %v1010
        %v1071 = vand.u32 2147483647, %v1013
        %v1072 = vand.u32 2147483647, %v1018
        %v1073 = vand.u32 2147483647, %v1021
        %v1074 = vand.u32 2147483647, %v1026
        %v1075 = vand.u32 2147483647, %v1029
        %v1076 = vand.u32 2147483647, %v1034
        %v1077 = vand.u32 2147483647, %v1037
        %v1078 = vand.u32 2147483647, %v1042
        %v1079 = vand.u32 2147483647, %v1045
        %vm1080 = vcmp.lt.f32.partialorder %v1064, 0.001
        %vm1081 = vcmp.lt.f32.partialorder %v1065, 0.001
        %vm1082 = vcmp.lt.f32.partialorder %v1066, 0.001
        %vm1083 = vcmp.lt.f32.partialorder %v1067, 0.001
        %vm1084 = vcmp.lt.f32.partialorder %v1068, 0.001
        %vm1085 = vcmp.lt.f32.partialorder %v1069, 0.001
        %vm1086 = vcmp.lt.f32.partialorder %v1070, 0.001
        %vm1087 = vcmp.lt.f32.partialorder %v1071, 0.001
        %vm1088 = vcmp.lt.f32.partialorder %v1072, 0.001
        %vm1089 = vcmp.lt.f32.partialorder %v1073, 0.001
        %vm1090 = vcmp.lt.f32.partialorder %v1074, 0.001
        %vm1091 = vcmp.lt.f32.partialorder %v1075, 0.001
        %vm1092 = vcmp.lt.f32.partialorder %v1076, 0.001
        %vm1093 = vcmp.lt.f32.partialorder %v1077, 0.001
        %vm1094 = vcmp.lt.f32.partialorder %v1078, 0.001
        %vm1095 = vcmp.lt.f32.partialorder %v1079, 0.001
        %v1096 = vmul.f32 %v986, 0.5
        %v1097 = vmul.f32 %v989, 0.5
        %v1098 = vmul.f32 %v994, 0.5
        %v1099 = vmul.f32 %v997, 0.5
        %v1100 = vmul.f32 %v1002, 0.5
        %v1101 = vmul.f32 %v1005, 0.5
        %v1102 = vmul.f32 %v1010, 0.5
        %v1103 = vmul.f32 %v1013, 0.5
        %v1104 = vmul.f32 %v1018, 0.5
        %v1105 = vmul.f32 %v1021, 0.5
        %v1106 = vmul.f32 %v1026, 0.5
        %v1107 = vmul.f32 %v1029, 0.5
        %v1108 = vmul.f32 %v1034, 0.5
        %v1109 = vmul.f32 %v1037, 0.5
        %v1110 = vmul.f32 %v1042, 0.5
        %v1111 = vmul.f32 %v1045, 0.5
        %v1112 = vadd.f32 %v1096, 1.0
        %v1113 = vadd.f32 %v1097, 1.0
        %v1114 = vadd.f32 %v1098, 1.0
        %v1115 = vadd.f32 %v1099, 1.0
        %v1116 = vadd.f32 %v1100, 1.0
        %v1117 = vadd.f32 %v1101, 1.0
        %v1118 = vadd.f32 %v1102, 1.0
        %v1119 = vadd.f32 %v1103, 1.0
        %v1120 = vadd.f32 %v1104, 1.0
        %v1121 = vadd.f32 %v1105, 1.0
        %v1122 = vadd.f32 %v1106, 1.0
        %v1123 = vadd.f32 %v1107, 1.0
        %v1124 = vadd.f32 %v1108, 1.0
        %v1125 = vadd.f32 %v1109, 1.0
        %v1126 = vadd.f32 %v1110, 1.0
        %v1127 = vadd.f32 %v1111, 1.0
        %v1128 = vmul.f32 %v986, %v1112
        %v1129 = vmul.f32 %v989, %v1113
        %v1130 = vmul.f32 %v994, %v1114
        %v1131 = vmul.f32 %v997, %v1115
        %v1132 = vmul.f32 %v1002, %v1116
        %v1133 = vmul.f32 %v1005, %v1117
        %v1134 = vmul.f32 %v1010, %v1118
        %v1135 = vmul.f32 %v1013, %v1119
        %v1136 = vmul.f32 %v1018, %v1120
        %v1137 = vmul.f32 %v1021, %v1121
        %v1138 = vmul.f32 %v1026, %v1122
        %v1139 = vmul.f32 %v1029, %v1123
        %v1140 = vmul.f32 %v1034, %v1124
        %v1141 = vmul.f32 %v1037, %v1125
        %v1142 = vmul.f32 %v1042, %v1126
        %v1143 = vmul.f32 %v1045, %v1127
        %v1144 = vmul.f32 %v986, 1.442695
        %v1145 = vpow.pop %v1144
        %v1146 = vmul.f32 %v989, 1.442695
        %v1147 = vpow.pop %v1146
        %v1148 = vmul.f32 %v994, 1.442695
        %v1149 = vpow.pop %v1148
        %v1150 = vmul.f32 %v997, 1.442695
        %v1151 = vpow.pop %v1150
        %v1152 = vmul.f32 %v1002, 1.442695
        %v1153 = vpow.pop %v1152
        %v1154 = vmul.f32 %v1005, 1.442695
        %v1155 = vpow.pop %v1154
        %v1156 = vmul.f32 %v1010, 1.442695
        %v1157 = vpow.pop %v1156
        %v1158 = vmul.f32 %v1013, 1.442695
        %v1159 = vpow.pop %v1158
        %v1160 = vmul.f32 %v1018, 1.442695
        %v1161 = vpow.pop %v1160
        %v1162 = vmul.f32 %v1021, 1.442695
        %v1163 = vpow.pop %v1162
        %v1164 = vmul.f32 %v1026, 1.442695
        %v1165 = vpow.pop %v1164
        %v1166 = vmul.f32 %v1029, 1.442695
        %v1167 = vpow.pop %v1166
        %v1168 = vmul.f32 %v1034, 1.442695
        %v1169 = vpow.pop %v1168
        %v1170 = vmul.f32 %v1037, 1.442695
        %v1171 = vpow.pop %v1170
        %v1172 = vmul.f32 %v1042, 1.442695
        %v1173 = vpow.pop %v1172
        %v1174 = vmul.f32 %v1045, 1.442695
        %v1175 = vpow.pop %v1174
        %v1176 = vsub.f32 %v1145, 1.0
        %v1177 = vsub.f32 %v1147, 1.0
        %v1178 = vsub.f32 %v1149, 1.0
        %v1179 = vsub.f32 %v1151, 1.0
        %v1180 = vsub.f32 %v1153, 1.0
        %v1181 = vsub.f32 %v1155, 1.0
        %v1182 = vsub.f32 %v1157, 1.0
        %v1183 = vsub.f32 %v1159, 1.0
        %v1184 = vsub.f32 %v1161, 1.0
        %v1185 = vsub.f32 %v1163, 1.0
        %v1186 = vsub.f32 %v1165, 1.0
        %v1187 = vsub.f32 %v1167, 1.0
        %v1188 = vsub.f32 %v1169, 1.0
        %v1189 = vsub.f32 %v1171, 1.0
        %v1190 = vsub.f32 %v1173, 1.0
        %v1191 = vsub.f32 %v1175, 1.0
        %v1192 = vsel %vm1080, %v1128, %v1176
        %v1193 = vsel %vm1081, %v1129, %v1177
        %v1194 = vsel %vm1082, %v1130, %v1178
        %v1195 = vsel %vm1083, %v1131, %v1179
        %v1196 = vsel %vm1084, %v1132, %v1180
        %v1197 = vsel %vm1085, %v1133, %v1181
        %v1198 = vsel %vm1086, %v1134, %v1182
        %v1199 = vsel %vm1087, %v1135, %v1183
        %v1200 = vsel %vm1088, %v1136, %v1184
        %v1201 = vsel %vm1089, %v1137, %v1185
        %v1202 = vsel %vm1090, %v1138, %v1186
        %v1203 = vsel %vm1091, %v1139, %v1187
        %v1204 = vsel %vm1092, %v1140, %v1188
        %v1205 = vsel %vm1093, %v1141, %v1189
        %v1206 = vsel %vm1094, %v1142, %v1190
        %v1207 = vsel %vm1095, %v1143, %v1191
        %v1208 = vmul.f32 %v1192, 1.6732632
        %v1209 = vmul.f32 %v1193, 1.6732632
        %v1210 = vmul.f32 %v1194, 1.6732632
        %v1211 = vmul.f32 %v1195, 1.6732632
        %v1212 = vmul.f32 %v1196, 1.6732632
        %v1213 = vmul.f32 %v1197, 1.6732632
        %v1214 = vmul.f32 %v1198, 1.6732632
        %v1215 = vmul.f32 %v1199, 1.6732632
        %v1216 = vmul.f32 %v1200, 1.6732632
        %v1217 = vmul.f32 %v1201, 1.6732632
        %v1218 = vmul.f32 %v1202, 1.6732632
        %v1219 = vmul.f32 %v1203, 1.6732632
        %v1220 = vmul.f32 %v1204, 1.6732632
        %v1221 = vmul.f32 %v1205, 1.6732632
        %v1222 = vmul.f32 %v1206, 1.6732632
        %v1223 = vmul.f32 %v1207, 1.6732632
        %v1224 = vsel %vm1048, %v986, %v1208
        %v1225 = vsel %vm1049, %v989, %v1209
        %v1226 = vsel %vm1050, %v994, %v1210
        %v1227 = vsel %vm1051, %v997, %v1211
        %v1228 = vsel %vm1052, %v1002, %v1212
        %v1229 = vsel %vm1053, %v1005, %v1213
        %v1230 = vsel %vm1054, %v1010, %v1214
        %v1231 = vsel %vm1055, %v1013, %v1215
        %v1232 = vsel %vm1056, %v1018, %v1216
        %v1233 = vsel %vm1057, %v1021, %v1217
        %v1234 = vsel %vm1058, %v1026, %v1218
        %v1235 = vsel %vm1059, %v1029, %v1219
        %v1236 = vsel %vm1060, %v1034, %v1220
        %v1237 = vsel %vm1061, %v1037, %v1221
        %v1238 = vsel %vm1062, %v1042, %v1222
        %v1239 = vsel %vm1063, %v1045, %v1223
        %v1240 = vmul.f32 %v1224, 1.050701
        %v1241 = vmul.f32 %v1225, 1.050701
        %v1242 = vmul.f32 %v1226, 1.050701
        %v1243 = vmul.f32 %v1227, 1.050701
        %v1244 = vmul.f32 %v1228, 1.050701
        %v1245 = vmul.f32 %v1229, 1.050701
        %v1246 = vmul.f32 %v1230, 1.050701
        %v1247 = vmul.f32 %v1231, 1.050701
        %v1248 = vmul.f32 %v1232, 1.050701
        %v1249 = vmul.f32 %v1233, 1.050701
        %v1250 = vmul.f32 %v1234, 1.050701
        %v1251 = vmul.f32 %v1235, 1.050701
        %v1252 = vmul.f32 %v1236, 1.050701
        %v1253 = vmul.f32 %v1237, 1.050701
        %v1254 = vmul.f32 %v1238, 1.050701
        %v1255 = vmul.f32 %v1239, 1.050701
        %v1256 = vpack.c.bf16 %v1241, %v1240
        %v1257 = vpack.c.bf16 %v1243, %v1242
        %v1258 = vpack.c.bf16 %v1245, %v1244
        %v1259 = vpack.c.bf16 %v1247, %v1246
        %v1260 = vpack.c.bf16 %v1249, %v1248
        %v1261 = vpack.c.bf16 %v1251, %v1250
        %v1262 = vpack.c.bf16 %v1253, %v1252
        %v1263 = vpack.c.bf16 %v1255, %v1254
        %v1264 = vld [vmem:[%s5] sm:$0xf]
        %v1265 = vld [vmem:[%s5 + $0x4] sm:$0xf]
        %v1266 = vld [vmem:[%s5 + $0x8] sm:$0xf]
        %v1267 = vld [vmem:[%s5 + $0xc] sm:$0xf]
        %v1268 = vld [vmem:[%s5 + $0x10] sm:$0xf]
        %v1269 = vld [vmem:[%s5 + $0x14] sm:$0xf]
        %v1270 = vld [vmem:[%s5 + $0x18] sm:$0xf]
        %v1271 = vld [vmem:[%s5 + $0x1c] sm:$0xf]
        %v1272 = vld [vmem:[%s7] sm:$0x1]
        %v1274 = vlaneseq
        %v1275 = vshrl.u32 %v1274, 7
        %v1276 = vsub.s32 0, %v1275
        %v1277 = vrot.slane %v1272, %v1276
        %v1287 = vunpack.c.l.b16 %v1264
        %v1288 = vunpack.c.l.b16 %v1265
        %v1289 = vunpack.c.l.b16 %v1266
        %v1290 = vunpack.c.l.b16 %v1267
        %v1291 = vunpack.c.l.b16 %v1268
        %v1292 = vunpack.c.l.b16 %v1269
        %v1293 = vunpack.c.l.b16 %v1270
        %v1294 = vunpack.c.l.b16 %v1271
        %v1295 = vpack.c.b16 %v1288, %v1287
        %v1296 = vpack.c.b16 %v1290, %v1289
        %v1297 = vpack.c.b16 %v1292, %v1291
        %v1298 = vpack.c.b16 %v1294, %v1293
        %vm1303 = vcmask 523264
        %v1305 = vsel %vm1303, %v1256, 0
        %v1308 = vsel %vm1303, %v1257, 0
        %v1311 = vsel %vm1303, %v1258, 0
        %v1314 = vsel %vm1303, %v1259, 0
        %v1317 = vsel %vm1303, %v1260, 0
        %v1320 = vsel %vm1303, %v1261, 0
        %v1323 = vsel %vm1303, %v1262, 0
        %v1326 = vsel %vm1303, %v1263, 0
        %1328 = vmatprep.subr.bf16.mxu0 0
        %1329 = vmatpush1.bf16.msra.mxu0 0
        %1330 = vmatprep.subr.bf16.mxu0 0
        %1331 = vmatpush1.bf16.msra.mxu0 0
        %1332 = vmatprep.subr.bf16.mxu0 0
        %1333 = vmatpush1.bf16.msra.mxu0 0
        %1334 = vmatprep.subr.bf16.mxu0 0
        %1335 = vmatpush1.bf16.msra.mxu0 0
        %1336 = vmatprep.subr.bf16.mxu0 0
        %1337 = vmatpush1.bf16.msra.mxu0 %v1298
        %1338 = vmatprep.subr.bf16.mxu0 0
        %1339 = vmatpush1.bf16.msra.mxu0 %v1297
        %1340 = vmatprep.subr.bf16.mxu0 0
        %1341 = vmatpush1.bf16.msra.mxu0 %v1296
        %1342 = vmatprep.subr.bf16.mxu0 0
        %1343 = vmatpush1.bf16.msra.mxu0 %v1295
        %1344 = vmatprep.subr.bf16.mxu0 0
        %1345 = vmatpush2.bf16.msra.mxu0 0
        %1346 = vmatprep.subr.bf16.mxu0 0
        %1347 = vmatpush2.bf16.msra.mxu0 0
        %1348 = vmatprep.subr.bf16.mxu0 0
        %1349 = vmatpush2.bf16.msra.mxu0 0
        %1350 = vmatprep.subr.bf16.mxu0 0
        %1351 = vmatpush2.bf16.msra.mxu0 0
        %1352 = vmatprep.subr.bf16.mxu0 0
        %1353 = vmatpush2.bf16.msra.mxu0 0
        %1354 = vmatprep.subr.bf16.mxu0 0
        %1355 = vmatpush2.bf16.msra.mxu0 0
        %1356 = vmatprep.subr.bf16.mxu0 0
        %1357 = vmatpush2.bf16.msra.mxu0 0
        %1358 = vmatprep.subr.bf16.mxu0 0
        %1359 = vmatpush2.bf16.msra.mxu0 0
        %1360 = vmatprep.mubr.bf16.mxu0 0
        %1361 = vmatmul.mubr.bf16.gmra.mxu0 %v1305
        %v1362 = vpop.f32.mrf.mxu0
        %v1363 = vadd.f32 %v1277, %v1362
        %v1364 = vpop.f32.mrf.mxu0
        %v1365 = vpop.f32.mrf.mxu0
        %v1366 = vadd.f32 %v1277, %v1365
        %v1367 = vpop.f32.mrf.mxu0
        %1368 = vmatprep.mubr.bf16.mxu0 0
        %1369 = vmatmul.mubr.bf16.gmra.mxu0 %v1308
        %v1370 = vpop.f32.mrf.mxu0
        %v1371 = vadd.f32 %v1277, %v1370
        %v1372 = vpop.f32.mrf.mxu0
        %v1373 = vpop.f32.mrf.mxu0
        %v1374 = vadd.f32 %v1277, %v1373
        %v1375 = vpop.f32.mrf.mxu0
        %1376 = vmatprep.mubr.bf16.mxu0 0
        %1377 = vmatmul.mubr.bf16.gmra.mxu0 %v1311
        %v1378 = vpop.f32.mrf.mxu0
        %v1379 = vadd.f32 %v1277, %v1378
        %v1380 = vpop.f32.mrf.mxu0
        %v1381 = vpop.f32.mrf.mxu0
        %v1382 = vadd.f32 %v1277, %v1381
        %v1383 = vpop.f32.mrf.mxu0
        %1384 = vmatprep.mubr.bf16.mxu0 0
        %1385 = vmatmul.mubr.bf16.gmra.mxu0 %v1314
        %v1386 = vpop.f32.mrf.mxu0
        %v1387 = vadd.f32 %v1277, %v1386
        %v1388 = vpop.f32.mrf.mxu0
        %v1389 = vpop.f32.mrf.mxu0
        %v1390 = vadd.f32 %v1277, %v1389
        %v1391 = vpop.f32.mrf.mxu0
        %1392 = vmatprep.mubr.bf16.mxu0 0
        %1393 = vmatmul.mubr.bf16.gmra.mxu0 %v1317
        %v1394 = vpop.f32.mrf.mxu0
        %v1395 = vadd.f32 %v1277, %v1394
        %v1396 = vpop.f32.mrf.mxu0
        %v1397 = vpop.f32.mrf.mxu0
        %v1398 = vadd.f32 %v1277, %v1397
        %v1399 = vpop.f32.mrf.mxu0
        %1400 = vmatprep.mubr.bf16.mxu0 0
        %1401 = vmatmul.mubr.bf16.gmra.mxu0 %v1320
        %v1402 = vpop.f32.mrf.mxu0
        %v1403 = vadd.f32 %v1277, %v1402
        %v1404 = vpop.f32.mrf.mxu0
        %v1405 = vpop.f32.mrf.mxu0
        %v1406 = vadd.f32 %v1277, %v1405
        %v1407 = vpop.f32.mrf.mxu0
        %1408 = vmatprep.mubr.bf16.mxu0 0
        %1409 = vmatmul.mubr.bf16.gmra.mxu0 %v1323
        %v1410 = vpop.f32.mrf.mxu0
        %v1411 = vadd.f32 %v1277, %v1410
        %v1412 = vpop.f32.mrf.mxu0
        %v1413 = vpop.f32.mrf.mxu0
        %v1414 = vadd.f32 %v1277, %v1413
        %v1415 = vpop.f32.mrf.mxu0
        %1416 = vmatprep.mubr.bf16.mxu0 0
        %1417 = vmatmul.mubr.bf16.gmra.mxu0 %v1326
        %v1418 = vpop.f32.mrf.mxu0
        %v1419 = vadd.f32 %v1277, %v1418
        %v1420 = vpop.f32.mrf.mxu0
        %v1421 = vpop.f32.mrf.mxu0
        %v1422 = vadd.f32 %v1277, %v1421
        %v1423 = vpop.f32.mrf.mxu0
        %1424 = vdwg.mxu0
        %vm1425 = vcmp.gt.f32.partialorder %v1363, 0.0
        %vm1426 = vcmp.gt.f32.partialorder %v1366, 0.0
        %vm1427 = vcmp.gt.f32.partialorder %v1371, 0.0
        %vm1428 = vcmp.gt.f32.partialorder %v1374, 0.0
        %vm1429 = vcmp.gt.f32.partialorder %v1379, 0.0
        %vm1430 = vcmp.gt.f32.partialorder %v1382, 0.0
        %vm1431 = vcmp.gt.f32.partialorder %v1387, 0.0
        %vm1432 = vcmp.gt.f32.partialorder %v1390, 0.0
        %vm1433 = vcmp.gt.f32.partialorder %v1395, 0.0
        %vm1434 = vcmp.gt.f32.partialorder %v1398, 0.0
        %vm1435 = vcmp.gt.f32.partialorder %v1403, 0.0
        %vm1436 = vcmp.gt.f32.partialorder %v1406, 0.0
        %vm1437 = vcmp.gt.f32.partialorder %v1411, 0.0
        %vm1438 = vcmp.gt.f32.partialorder %v1414, 0.0
        %vm1439 = vcmp.gt.f32.partialorder %v1419, 0.0
        %vm1440 = vcmp.gt.f32.partialorder %v1422, 0.0
        %v1441 = vand.u32 2147483647, %v1363
        %v1442 = vand.u32 2147483647, %v1366
        %v1443 = vand.u32 2147483647, %v1371
        %v1444 = vand.u32 2147483647, %v1374
        %v1445 = vand.u32 2147483647, %v1379
        %v1446 = vand.u32 2147483647, %v1382
        %v1447 = vand.u32 2147483647, %v1387
        %v1448 = vand.u32 2147483647, %v1390
        %v1449 = vand.u32 2147483647, %v1395
        %v1450 = vand.u32 2147483647, %v1398
        %v1451 = vand.u32 2147483647, %v1403
        %v1452 = vand.u32 2147483647, %v1406
        %v1453 = vand.u32 2147483647, %v1411
        %v1454 = vand.u32 2147483647, %v1414
        %v1455 = vand.u32 2147483647, %v1419
        %v1456 = vand.u32 2147483647, %v1422
        %vm1457 = vcmp.lt.f32.partialorder %v1441, 0.001
        %vm1458 = vcmp.lt.f32.partialorder %v1442, 0.001
        %vm1459 = vcmp.lt.f32.partialorder %v1443, 0.001
        %vm1460 = vcmp.lt.f32.partialorder %v1444, 0.001
        %vm1461 = vcmp.lt.f32.partialorder %v1445, 0.001
        %vm1462 = vcmp.lt.f32.partialorder %v1446, 0.001
        %vm1463 = vcmp.lt.f32.partialorder %v1447, 0.001
        %vm1464 = vcmp.lt.f32.partialorder %v1448, 0.001
        %vm1465 = vcmp.lt.f32.partialorder %v1449, 0.001
        %vm1466 = vcmp.lt.f32.partialorder %v1450, 0.001
        %vm1467 = vcmp.lt.f32.partialorder %v1451, 0.001
        %vm1468 = vcmp.lt.f32.partialorder %v1452, 0.001
        %vm1469 = vcmp.lt.f32.partialorder %v1453, 0.001
        %vm1470 = vcmp.lt.f32.partialorder %v1454, 0.001
        %vm1471 = vcmp.lt.f32.partialorder %v1455, 0.001
        %vm1472 = vcmp.lt.f32.partialorder %v1456, 0.001
        %v1473 = vmul.f32 %v1363, 0.5
        %v1474 = vmul.f32 %v1366, 0.5
        %v1475 = vmul.f32 %v1371, 0.5
        %v1476 = vmul.f32 %v1374, 0.5
        %v1477 = vmul.f32 %v1379, 0.5
        %v1478 = vmul.f32 %v1382, 0.5
        %v1479 = vmul.f32 %v1387, 0.5
        %v1480 = vmul.f32 %v1390, 0.5
        %v1481 = vmul.f32 %v1395, 0.5
        %v1482 = vmul.f32 %v1398, 0.5
        %v1483 = vmul.f32 %v1403, 0.5
        %v1484 = vmul.f32 %v1406, 0.5
        %v1485 = vmul.f32 %v1411, 0.5
        %v1486 = vmul.f32 %v1414, 0.5
        %v1487 = vmul.f32 %v1419, 0.5
        %v1488 = vmul.f32 %v1422, 0.5
        %v1489 = vadd.f32 %v1473, 1.0
        %v1490 = vadd.f32 %v1474, 1.0
        %v1491 = vadd.f32 %v1475, 1.0
        %v1492 = vadd.f32 %v1476, 1.0
        %v1493 = vadd.f32 %v1477, 1.0
        %v1494 = vadd.f32 %v1478, 1.0
        %v1495 = vadd.f32 %v1479, 1.0
        %v1496 = vadd.f32 %v1480, 1.0
        %v1497 = vadd.f32 %v1481, 1.0
        %v1498 = vadd.f32 %v1482, 1.0
        %v1499 = vadd.f32 %v1483, 1.0
        %v1500 = vadd.f32 %v1484, 1.0
        %v1501 = vadd.f32 %v1485, 1.0
        %v1502 = vadd.f32 %v1486, 1.0
        %v1503 = vadd.f32 %v1487, 1.0
        %v1504 = vadd.f32 %v1488, 1.0
        %v1505 = vmul.f32 %v1363, %v1489
        %v1506 = vmul.f32 %v1366, %v1490
        %v1507 = vmul.f32 %v1371, %v1491
        %v1508 = vmul.f32 %v1374, %v1492
        %v1509 = vmul.f32 %v1379, %v1493
        %v1510 = vmul.f32 %v1382, %v1494
        %v1511 = vmul.f32 %v1387, %v1495
        %v1512 = vmul.f32 %v1390, %v1496
        %v1513 = vmul.f32 %v1395, %v1497
        %v1514 = vmul.f32 %v1398, %v1498
        %v1515 = vmul.f32 %v1403, %v1499
        %v1516 = vmul.f32 %v1406, %v1500
        %v1517 = vmul.f32 %v1411, %v1501
        %v1518 = vmul.f32 %v1414, %v1502
        %v1519 = vmul.f32 %v1419, %v1503
        %v1520 = vmul.f32 %v1422, %v1504
        %v1521 = vmul.f32 %v1363, 1.442695
        %v1522 = vpow.pop %v1521
        %v1523 = vmul.f32 %v1366, 1.442695
        %v1524 = vpow.pop %v1523
        %v1525 = vmul.f32 %v1371, 1.442695
        %v1526 = vpow.pop %v1525
        %v1527 = vmul.f32 %v1374, 1.442695
        %v1528 = vpow.pop %v1527
        %v1529 = vmul.f32 %v1379, 1.442695
        %v1530 = vpow.pop %v1529
        %v1531 = vmul.f32 %v1382, 1.442695
        %v1532 = vpow.pop %v1531
        %v1533 = vmul.f32 %v1387, 1.442695
        %v1534 = vpow.pop %v1533
        %v1535 = vmul.f32 %v1390, 1.442695
        %v1536 = vpow.pop %v1535
        %v1537 = vmul.f32 %v1395, 1.442695
        %v1538 = vpow.pop %v1537
        %v1539 = vmul.f32 %v1398, 1.442695
        %v1540 = vpow.pop %v1539
        %v1541 = vmul.f32 %v1403, 1.442695
        %v1542 = vpow.pop %v1541
        %v1543 = vmul.f32 %v1406, 1.442695
        %v1544 = vpow.pop %v1543
        %v1545 = vmul.f32 %v1411, 1.442695
        %v1546 = vpow.pop %v1545
        %v1547 = vmul.f32 %v1414, 1.442695
        %v1548 = vpow.pop %v1547
        %v1549 = vmul.f32 %v1419, 1.442695
        %v1550 = vpow.pop %v1549
        %v1551 = vmul.f32 %v1422, 1.442695
        %v1552 = vpow.pop %v1551
        %v1553 = vsub.f32 %v1522, 1.0
        %v1554 = vsub.f32 %v1524, 1.0
        %v1555 = vsub.f32 %v1526, 1.0
        %v1556 = vsub.f32 %v1528, 1.0
        %v1557 = vsub.f32 %v1530, 1.0
        %v1558 = vsub.f32 %v1532, 1.0
        %v1559 = vsub.f32 %v1534, 1.0
        %v1560 = vsub.f32 %v1536, 1.0
        %v1561 = vsub.f32 %v1538, 1.0
        %v1562 = vsub.f32 %v1540, 1.0
        %v1563 = vsub.f32 %v1542, 1.0
        %v1564 = vsub.f32 %v1544, 1.0
        %v1565 = vsub.f32 %v1546, 1.0
        %v1566 = vsub.f32 %v1548, 1.0
        %v1567 = vsub.f32 %v1550, 1.0
        %v1568 = vsub.f32 %v1552, 1.0
        %v1569 = vsel %vm1457, %v1505, %v1553
        %v1570 = vsel %vm1458, %v1506, %v1554
        %v1571 = vsel %vm1459, %v1507, %v1555
        %v1572 = vsel %vm1460, %v1508, %v1556
        %v1573 = vsel %vm1461, %v1509, %v1557
        %v1574 = vsel %vm1462, %v1510, %v1558
        %v1575 = vsel %vm1463, %v1511, %v1559
        %v1576 = vsel %vm1464, %v1512, %v1560
        %v1577 = vsel %vm1465, %v1513, %v1561
        %v1578 = vsel %vm1466, %v1514, %v1562
        %v1579 = vsel %vm1467, %v1515, %v1563
        %v1580 = vsel %vm1468, %v1516, %v1564
        %v1581 = vsel %vm1469, %v1517, %v1565
        %v1582 = vsel %vm1470, %v1518, %v1566
        %v1583 = vsel %vm1471, %v1519, %v1567
        %v1584 = vsel %vm1472, %v1520, %v1568
        %v1585 = vmul.f32 %v1569, 1.6732632
        %v1586 = vmul.f32 %v1570, 1.6732632
        %v1587 = vmul.f32 %v1571, 1.6732632
        %v1588 = vmul.f32 %v1572, 1.6732632
        %v1589 = vmul.f32 %v1573, 1.6732632
        %v1590 = vmul.f32 %v1574, 1.6732632
        %v1591 = vmul.f32 %v1575, 1.6732632
        %v1592 = vmul.f32 %v1576, 1.6732632
        %v1593 = vmul.f32 %v1577, 1.6732632
        %v1594 = vmul.f32 %v1578, 1.6732632
        %v1595 = vmul.f32 %v1579, 1.6732632
        %v1596 = vmul.f32 %v1580, 1.6732632
        %v1597 = vmul.f32 %v1581, 1.6732632
        %v1598 = vmul.f32 %v1582, 1.6732632
        %v1599 = vmul.f32 %v1583, 1.6732632
        %v1600 = vmul.f32 %v1584, 1.6732632
        %v1601 = vsel %vm1425, %v1363, %v1585
        %v1602 = vsel %vm1426, %v1366, %v1586
        %v1603 = vsel %vm1427, %v1371, %v1587
        %v1604 = vsel %vm1428, %v1374, %v1588
        %v1605 = vsel %vm1429, %v1379, %v1589
        %v1606 = vsel %vm1430, %v1382, %v1590
        %v1607 = vsel %vm1431, %v1387, %v1591
        %v1608 = vsel %vm1432, %v1390, %v1592
        %v1609 = vsel %vm1433, %v1395, %v1593
        %v1610 = vsel %vm1434, %v1398, %v1594
        %v1611 = vsel %vm1435, %v1403, %v1595
        %v1612 = vsel %vm1436, %v1406, %v1596
        %v1613 = vsel %vm1437, %v1411, %v1597
        %v1614 = vsel %vm1438, %v1414, %v1598
        %v1615 = vsel %vm1439, %v1419, %v1599
        %v1616 = vsel %vm1440, %v1422, %v1600
        %v1617 = vmul.f32 %v1601, 1.050701
        %v1618 = vmul.f32 %v1602, 1.050701
        %v1619 = vmul.f32 %v1603, 1.050701
        %v1620 = vmul.f32 %v1604, 1.050701
        %v1621 = vmul.f32 %v1605, 1.050701
        %v1622 = vmul.f32 %v1606, 1.050701
        %v1623 = vmul.f32 %v1607, 1.050701
        %v1624 = vmul.f32 %v1608, 1.050701
        %v1625 = vmul.f32 %v1609, 1.050701
        %v1626 = vmul.f32 %v1610, 1.050701
        %v1627 = vmul.f32 %v1611, 1.050701
        %v1628 = vmul.f32 %v1612, 1.050701
        %v1629 = vmul.f32 %v1613, 1.050701
        %v1630 = vmul.f32 %v1614, 1.050701
        %v1631 = vmul.f32 %v1615, 1.050701
        %v1632 = vmul.f32 %v1616, 1.050701
        %v1633 = vpack.c.bf16 %v1618, %v1617
        %v1634 = vpack.c.bf16 %v1620, %v1619
        %v1635 = vpack.c.bf16 %v1622, %v1621
        %v1636 = vpack.c.bf16 %v1624, %v1623
        %v1637 = vpack.c.bf16 %v1626, %v1625
        %v1638 = vpack.c.bf16 %v1628, %v1627
        %v1639 = vpack.c.bf16 %v1630, %v1629
        %v1640 = vpack.c.bf16 %v1632, %v1631
        %v1641 = vld [vmem:[#allocation7] sm:$0xff]
        %v1642 = vld [vmem:[#allocation7 + $0x8] sm:$0xff]
        %v1643 = vld [vmem:[#allocation7 + $0x10] sm:$0xff]
        %v1644 = vld [vmem:[#allocation7 + $0x18] sm:$0xff]
        %v1645 = vld [vmem:[#allocation7 + $0x20] sm:$0xff]
        %v1646 = vld [vmem:[#allocation7 + $0x28] sm:$0xff]
        %v1647 = vld [vmem:[#allocation7 + $0x30] sm:$0xff]
        %v1648 = vld [vmem:[#allocation7 + $0x38] sm:$0xff]
        %v1649 = vld [vmem:[#allocation7 + $0x40] sm:$0xff]
        %v1650 = vld [vmem:[#allocation7 + $0x48] sm:$0xff]
        %v1651 = vld [vmem:[#allocation7 + $0x50] sm:$0xff]
        %v1652 = vld [vmem:[#allocation7 + $0x58] sm:$0xff]
        %v1653 = vld [vmem:[#allocation7 + $0x60] sm:$0xff]
        %v1654 = vld [vmem:[#allocation7 + $0x68] sm:$0xff]
        %v1655 = vld [vmem:[#allocation7 + $0x70] sm:$0xff]
        %v1656 = vld [vmem:[#allocation7 + $0x78] sm:$0xff]
        %v1657 = vld [vmem:[%s8] sm:$0x3]
        %v1659 = vlaneseq
        %v1660 = vshrl.u32 %v1659, 7
        %v1661 = vsub.s32 0, %v1660
        %v1662 = vrot.slane %v1657, %v1661
        %v1663 = vlaneseq
        %v1664 = vshrl.u32 %v1663, 7
        %v1665 = vsub.s32 1, %v1664
        %v1666 = vrot.slane %v1657, %v1665
        %v1685 = vunpack.c.l.b16 %v1641
        %v1686 = vunpack.c.h.b16 %v1641
        %v1687 = vunpack.c.l.b16 %v1642
        %v1688 = vunpack.c.h.b16 %v1642
        %v1689 = vunpack.c.l.b16 %v1643
        %v1690 = vunpack.c.h.b16 %v1643
        %v1691 = vunpack.c.l.b16 %v1644
        %v1692 = vunpack.c.h.b16 %v1644
        %v1693 = vunpack.c.l.b16 %v1645
        %v1694 = vunpack.c.h.b16 %v1645
        %v1695 = vunpack.c.l.b16 %v1646
        %v1696 = vunpack.c.h.b16 %v1646
        %v1697 = vunpack.c.l.b16 %v1647
        %v1698 = vunpack.c.h.b16 %v1647
        %v1699 = vunpack.c.l.b16 %v1648
        %v1700 = vunpack.c.h.b16 %v1648
        %v1701 = vunpack.c.l.b16 %v1649
        %v1702 = vunpack.c.h.b16 %v1649
        %v1703 = vunpack.c.l.b16 %v1650
        %v1704 = vunpack.c.h.b16 %v1650
        %v1705 = vunpack.c.l.b16 %v1651
        %v1706 = vunpack.c.h.b16 %v1651
        %v1707 = vunpack.c.l.b16 %v1652
        %v1708 = vunpack.c.h.b16 %v1652
        %v1709 = vunpack.c.l.b16 %v1653
        %v1710 = vunpack.c.h.b16 %v1653
        %v1711 = vunpack.c.l.b16 %v1654
        %v1712 = vunpack.c.h.b16 %v1654
        %v1713 = vunpack.c.l.b16 %v1655
        %v1714 = vunpack.c.h.b16 %v1655
        %v1715 = vunpack.c.l.b16 %v1656
        %v1716 = vunpack.c.h.b16 %v1656
        %v1717 = vpack.c.b16 %v1687, %v1685
        %v1718 = vpack.c.b16 %v1688, %v1686
        %v1719 = vpack.c.b16 %v1691, %v1689
        %v1720 = vpack.c.b16 %v1692, %v1690
        %v1721 = vpack.c.b16 %v1695, %v1693
        %v1722 = vpack.c.b16 %v1696, %v1694
        %v1723 = vpack.c.b16 %v1699, %v1697
        %v1724 = vpack.c.b16 %v1700, %v1698
        %v1725 = vpack.c.b16 %v1703, %v1701
        %v1726 = vpack.c.b16 %v1704, %v1702
        %v1727 = vpack.c.b16 %v1707, %v1705
        %v1728 = vpack.c.b16 %v1708, %v1706
        %v1729 = vpack.c.b16 %v1711, %v1709
        %v1730 = vpack.c.b16 %v1712, %v1710
        %v1731 = vpack.c.b16 %v1715, %v1713
        %v1732 = vpack.c.b16 %v1716, %v1714
        %1749 = vmatprep.subr.bf16.mxu0 %v1732
        %1750 = vmatpush1.bf16.msra.mxu0 %v1731
        %1751 = vmatprep.subr.bf16.mxu0 %v1730
        %1752 = vmatpush1.bf16.msra.mxu0 %v1729
        %1753 = vmatprep.subr.bf16.mxu0 %v1728
        %1754 = vmatpush1.bf16.msra.mxu0 %v1727
        %1755 = vmatprep.subr.bf16.mxu0 %v1726
        %1756 = vmatpush1.bf16.msra.mxu0 %v1725
        %1757 = vmatprep.subr.bf16.mxu0 %v1724
        %1758 = vmatpush1.bf16.msra.mxu0 %v1723
        %1759 = vmatprep.subr.bf16.mxu0 %v1722
        %1760 = vmatpush1.bf16.msra.mxu0 %v1721
        %1761 = vmatprep.subr.bf16.mxu0 %v1720
        %1762 = vmatpush1.bf16.msra.mxu0 %v1719
        %1763 = vmatprep.subr.bf16.mxu0 %v1718
        %1764 = vmatpush1.bf16.msra.mxu0 %v1717
        %1765 = vmatprep.subr.bf16.mxu0 0
        %1766 = vmatpush2.bf16.msra.mxu0 0
        %1767 = vmatprep.subr.bf16.mxu0 0
        %1768 = vmatpush2.bf16.msra.mxu0 0
        %1769 = vmatprep.subr.bf16.mxu0 0
        %1770 = vmatpush2.bf16.msra.mxu0 0
        %1771 = vmatprep.subr.bf16.mxu0 0
        %1772 = vmatpush2.bf16.msra.mxu0 0
        %1773 = vmatprep.subr.bf16.mxu0 0
        %1774 = vmatpush2.bf16.msra.mxu0 0
        %1775 = vmatprep.subr.bf16.mxu0 0
        %1776 = vmatpush2.bf16.msra.mxu0 0
        %1777 = vmatprep.subr.bf16.mxu0 0
        %1778 = vmatpush2.bf16.msra.mxu0 0
        %1779 = vmatprep.subr.bf16.mxu0 0
        %1780 = vmatpush2.bf16.msra.mxu0 0
        %1781 = vmatprep.mubr.bf16.mxu0 0
        %1782 = vmatmul.mubr.bf16.gmra.mxu0 %v1633
        %v1783 = vpop.f32.mrf.mxu0
        %v1784 = vadd.f32 %v1662, %v1783
        %v1785 = vpop.f32.mrf.mxu0
        %v1786 = vadd.f32 %v1666, %v1785
        %v1787 = vpop.f32.mrf.mxu0
        %v1788 = vadd.f32 %v1662, %v1787
        %v1789 = vpop.f32.mrf.mxu0
        %v1790 = vadd.f32 %v1666, %v1789
        %1791 = vmatprep.mubr.bf16.mxu0 0
        %1792 = vmatmul.mubr.bf16.gmra.mxu0 %v1634
        %v1793 = vpop.f32.mrf.mxu0
        %v1794 = vadd.f32 %v1662, %v1793
        %v1795 = vpop.f32.mrf.mxu0
        %v1796 = vadd.f32 %v1666, %v1795
        %v1797 = vpop.f32.mrf.mxu0
        %v1798 = vadd.f32 %v1662, %v1797
        %v1799 = vpop.f32.mrf.mxu0
        %v1800 = vadd.f32 %v1666, %v1799
        %1801 = vmatprep.mubr.bf16.mxu0 0
        %1802 = vmatmul.mubr.bf16.gmra.mxu0 %v1635
        %v1803 = vpop.f32.mrf.mxu0
        %v1804 = vadd.f32 %v1662, %v1803
        %v1805 = vpop.f32.mrf.mxu0
        %v1806 = vadd.f32 %v1666, %v1805
        %v1807 = vpop.f32.mrf.mxu0
        %v1808 = vadd.f32 %v1662, %v1807
        %v1809 = vpop.f32.mrf.mxu0
        %v1810 = vadd.f32 %v1666, %v1809
        %1811 = vmatprep.mubr.bf16.mxu0 0
        %1812 = vmatmul.mubr.bf16.gmra.mxu0 %v1636
        %v1813 = vpop.f32.mrf.mxu0
        %v1814 = vadd.f32 %v1662, %v1813
        %v1815 = vpop.f32.mrf.mxu0
        %v1816 = vadd.f32 %v1666, %v1815
        %v1817 = vpop.f32.mrf.mxu0
        %v1818 = vadd.f32 %v1662, %v1817
        %v1819 = vpop.f32.mrf.mxu0
        %v1820 = vadd.f32 %v1666, %v1819
        %1821 = vmatprep.mubr.bf16.mxu0 0
        %1822 = vmatmul.mubr.bf16.gmra.mxu0 %v1637
        %v1823 = vpop.f32.mrf.mxu0
        %v1824 = vadd.f32 %v1662, %v1823
        %v1825 = vpop.f32.mrf.mxu0
        %v1826 = vadd.f32 %v1666, %v1825
        %v1827 = vpop.f32.mrf.mxu0
        %v1828 = vadd.f32 %v1662, %v1827
        %v1829 = vpop.f32.mrf.mxu0
        %v1830 = vadd.f32 %v1666, %v1829
        %1831 = vmatprep.mubr.bf16.mxu0 0
        %1832 = vmatmul.mubr.bf16.gmra.mxu0 %v1638
        %v1833 = vpop.f32.mrf.mxu0
        %v1834 = vadd.f32 %v1662, %v1833
        %v1835 = vpop.f32.mrf.mxu0
        %v1836 = vadd.f32 %v1666, %v1835
        %v1837 = vpop.f32.mrf.mxu0
        %v1838 = vadd.f32 %v1662, %v1837
        %v1839 = vpop.f32.mrf.mxu0
        %v1840 = vadd.f32 %v1666, %v1839
        %1841 = vmatprep.mubr.bf16.mxu0 0
        %1842 = vmatmul.mubr.bf16.gmra.mxu0 %v1639
        %v1843 = vpop.f32.mrf.mxu0
        %v1844 = vadd.f32 %v1662, %v1843
        %v1845 = vpop.f32.mrf.mxu0
        %v1846 = vadd.f32 %v1666, %v1845
        %v1847 = vpop.f32.mrf.mxu0
        %v1848 = vadd.f32 %v1662, %v1847
        %v1849 = vpop.f32.mrf.mxu0
        %v1850 = vadd.f32 %v1666, %v1849
        %1851 = vmatprep.mubr.bf16.mxu0 0
        %1852 = vmatmul.mubr.bf16.gmra.mxu0 %v1640
        %v1853 = vpop.f32.mrf.mxu0
        %v1854 = vadd.f32 %v1662, %v1853
        %v1855 = vpop.f32.mrf.mxu0
        %v1856 = vadd.f32 %v1666, %v1855
        %v1857 = vpop.f32.mrf.mxu0
        %v1858 = vadd.f32 %v1662, %v1857
        %v1859 = vpop.f32.mrf.mxu0
        %v1860 = vadd.f32 %v1666, %v1859
        %1861 = vdwg.mxu0
        %vm1862 = vcmp.gt.f32.partialorder %v1784, 0.0
        %vm1863 = vcmp.gt.f32.partialorder %v1786, 0.0
        %vm1864 = vcmp.gt.f32.partialorder %v1788, 0.0
        %vm1865 = vcmp.gt.f32.partialorder %v1790, 0.0
        %vm1866 = vcmp.gt.f32.partialorder %v1794, 0.0
        %vm1867 = vcmp.gt.f32.partialorder %v1796, 0.0
        %vm1868 = vcmp.gt.f32.partialorder %v1798, 0.0
        %vm1869 = vcmp.gt.f32.partialorder %v1800, 0.0
        %vm1870 = vcmp.gt.f32.partialorder %v1804, 0.0
        %vm1871 = vcmp.gt.f32.partialorder %v1806, 0.0
        %vm1872 = vcmp.gt.f32.partialorder %v1808, 0.0
        %vm1873 = vcmp.gt.f32.partialorder %v1810, 0.0
        %vm1874 = vcmp.gt.f32.partialorder %v1814, 0.0
        %vm1875 = vcmp.gt.f32.partialorder %v1816, 0.0
        %vm1876 = vcmp.gt.f32.partialorder %v1818, 0.0
        %vm1877 = vcmp.gt.f32.partialorder %v1820, 0.0
        %vm1878 = vcmp.gt.f32.partialorder %v1824, 0.0
        %vm1879 = vcmp.gt.f32.partialorder %v1826, 0.0
        %vm1880 = vcmp.gt.f32.partialorder %v1828, 0.0
        %vm1881 = vcmp.gt.f32.partialorder %v1830, 0.0
        %vm1882 = vcmp.gt.f32.partialorder %v1834, 0.0
        %vm1883 = vcmp.gt.f32.partialorder %v1836, 0.0
        %vm1884 = vcmp.gt.f32.partialorder %v1838, 0.0
        %vm1885 = vcmp.gt.f32.partialorder %v1840, 0.0
        %vm1886 = vcmp.gt.f32.partialorder %v1844, 0.0
        %vm1887 = vcmp.gt.f32.partialorder %v1846, 0.0
        %vm1888 = vcmp.gt.f32.partialorder %v1848, 0.0
        %vm1889 = vcmp.gt.f32.partialorder %v1850, 0.0
        %vm1890 = vcmp.gt.f32.partialorder %v1854, 0.0
        %vm1891 = vcmp.gt.f32.partialorder %v1856, 0.0
        %vm1892 = vcmp.gt.f32.partialorder %v1858, 0.0
        %vm1893 = vcmp.gt.f32.partialorder %v1860, 0.0
        %v1894 = vand.u32 2147483647, %v1784
        %v1895 = vand.u32 2147483647, %v1786
        %v1896 = vand.u32 2147483647, %v1788
        %v1897 = vand.u32 2147483647, %v1790
        %v1898 = vand.u32 2147483647, %v1794
        %v1899 = vand.u32 2147483647, %v1796
        %v1900 = vand.u32 2147483647, %v1798
        %v1901 = vand.u32 2147483647, %v1800
        %v1902 = vand.u32 2147483647, %v1804
        %v1903 = vand.u32 2147483647, %v1806
        %v1904 = vand.u32 2147483647, %v1808
        %v1905 = vand.u32 2147483647, %v1810
        %v1906 = vand.u32 2147483647, %v1814
        %v1907 = vand.u32 2147483647, %v1816
        %v1908 = vand.u32 2147483647, %v1818
        %v1909 = vand.u32 2147483647, %v1820
        %v1910 = vand.u32 2147483647, %v1824
        %v1911 = vand.u32 2147483647, %v1826
        %v1912 = vand.u32 2147483647, %v1828
        %v1913 = vand.u32 2147483647, %v1830
        %v1914 = vand.u32 2147483647, %v1834
        %v1915 = vand.u32 2147483647, %v1836
        %v1916 = vand.u32 2147483647, %v1838
        %v1917 = vand.u32 2147483647, %v1840
        %v1918 = vand.u32 2147483647, %v1844
        %v1919 = vand.u32 2147483647, %v1846
        %v1920 = vand.u32 2147483647, %v1848
        %v1921 = vand.u32 2147483647, %v1850
        %v1922 = vand.u32 2147483647, %v1854
        %v1923 = vand.u32 2147483647, %v1856
        %v1924 = vand.u32 2147483647, %v1858
        %v1925 = vand.u32 2147483647, %v1860
        %vm1926 = vcmp.lt.f32.partialorder %v1894, 0.001
        %vm1927 = vcmp.lt.f32.partialorder %v1895, 0.001
        %vm1928 = vcmp.lt.f32.partialorder %v1896, 0.001
        %vm1929 = vcmp.lt.f32.partialorder %v1897, 0.001
        %vm1930 = vcmp.lt.f32.partialorder %v1898, 0.001
        %vm1931 = vcmp.lt.f32.partialorder %v1899, 0.001
        %vm1932 = vcmp.lt.f32.partialorder %v1900, 0.001
        %vm1933 = vcmp.lt.f32.partialorder %v1901, 0.001
        %vm1934 = vcmp.lt.f32.partialorder %v1902, 0.001
        %vm1935 = vcmp.lt.f32.partialorder %v1903, 0.001
        %vm1936 = vcmp.lt.f32.partialorder %v1904, 0.001
        %vm1937 = vcmp.lt.f32.partialorder %v1905, 0.001
        %vm1938 = vcmp.lt.f32.partialorder %v1906, 0.001
        %vm1939 = vcmp.lt.f32.partialorder %v1907, 0.001
        %vm1940 = vcmp.lt.f32.partialorder %v1908, 0.001
        %vm1941 = vcmp.lt.f32.partialorder %v1909, 0.001
        %vm1942 = vcmp.lt.f32.partialorder %v1910, 0.001
        %vm1943 = vcmp.lt.f32.partialorder %v1911, 0.001
        %vm1944 = vcmp.lt.f32.partialorder %v1912, 0.001
        %vm1945 = vcmp.lt.f32.partialorder %v1913, 0.001
        %vm1946 = vcmp.lt.f32.partialorder %v1914, 0.001
        %vm1947 = vcmp.lt.f32.partialorder %v1915, 0.001
        %vm1948 = vcmp.lt.f32.partialorder %v1916, 0.001
        %vm1949 = vcmp.lt.f32.partialorder %v1917, 0.001
        %vm1950 = vcmp.lt.f32.partialorder %v1918, 0.001
        %vm1951 = vcmp.lt.f32.partialorder %v1919, 0.001
        %vm1952 = vcmp.lt.f32.partialorder %v1920, 0.001
        %vm1953 = vcmp.lt.f32.partialorder %v1921, 0.001
        %vm1954 = vcmp.lt.f32.partialorder %v1922, 0.001
        %vm1955 = vcmp.lt.f32.partialorder %v1923, 0.001
        %vm1956 = vcmp.lt.f32.partialorder %v1924, 0.001
        %vm1957 = vcmp.lt.f32.partialorder %v1925, 0.001
        %v1958 = vmul.f32 %v1784, 0.5
        %v1959 = vmul.f32 %v1786, 0.5
        %v1960 = vmul.f32 %v1788, 0.5
        %v1961 = vmul.f32 %v1790, 0.5
        %v1962 = vmul.f32 %v1794, 0.5
        %v1963 = vmul.f32 %v1796, 0.5
        %v1964 = vmul.f32 %v1798, 0.5
        %v1965 = vmul.f32 %v1800, 0.5
        %v1966 = vmul.f32 %v1804, 0.5
        %v1967 = vmul.f32 %v1806, 0.5
        %v1968 = vmul.f32 %v1808, 0.5
        %v1969 = vmul.f32 %v1810, 0.5
        %v1970 = vmul.f32 %v1814, 0.5
        %v1971 = vmul.f32 %v1816, 0.5
        %v1972 = vmul.f32 %v1818, 0.5
        %v1973 = vmul.f32 %v1820, 0.5
        %v1974 = vmul.f32 %v1824, 0.5
        %v1975 = vmul.f32 %v1826, 0.5
        %v1976 = vmul.f32 %v1828, 0.5
        %v1977 = vmul.f32 %v1830, 0.5
        %v1978 = vmul.f32 %v1834, 0.5
        %v1979 = vmul.f32 %v1836, 0.5
        %v1980 = vmul.f32 %v1838, 0.5
        %v1981 = vmul.f32 %v1840, 0.5
        %v1982 = vmul.f32 %v1844, 0.5
        %v1983 = vmul.f32 %v1846, 0.5
        %v1984 = vmul.f32 %v1848, 0.5
        %v1985 = vmul.f32 %v1850, 0.5
        %v1986 = vmul.f32 %v1854, 0.5
        %v1987 = vmul.f32 %v1856, 0.5
        %v1988 = vmul.f32 %v1858, 0.5
        %v1989 = vmul.f32 %v1860, 0.5
        %v1990 = vadd.f32 %v1958, 1.0
        %v1991 = vadd.f32 %v1959, 1.0
        %v1992 = vadd.f32 %v1960, 1.0
        %v1993 = vadd.f32 %v1961, 1.0
        %v1994 = vadd.f32 %v1962, 1.0
        %v1995 = vadd.f32 %v1963, 1.0
        %v1996 = vadd.f32 %v1964, 1.0
        %v1997 = vadd.f32 %v1965, 1.0
        %v1998 = vadd.f32 %v1966, 1.0
        %v1999 = vadd.f32 %v1967, 1.0
        %v2000 = vadd.f32 %v1968, 1.0
        %v2001 = vadd.f32 %v1969, 1.0
        %v2002 = vadd.f32 %v1970, 1.0
        %v2003 = vadd.f32 %v1971, 1.0
        %v2004 = vadd.f32 %v1972, 1.0
        %v2005 = vadd.f32 %v1973, 1.0
        %v2006 = vadd.f32 %v1974, 1.0
        %v2007 = vadd.f32 %v1975, 1.0
        %v2008 = vadd.f32 %v1976, 1.0
        %v2009 = vadd.f32 %v1977, 1.0
        %v2010 = vadd.f32 %v1978, 1.0
        %v2011 = vadd.f32 %v1979, 1.0
        %v2012 = vadd.f32 %v1980, 1.0
        %v2013 = vadd.f32 %v1981, 1.0
        %v2014 = vadd.f32 %v1982, 1.0
        %v2015 = vadd.f32 %v1983, 1.0
        %v2016 = vadd.f32 %v1984, 1.0
        %v2017 = vadd.f32 %v1985, 1.0
        %v2018 = vadd.f32 %v1986, 1.0
        %v2019 = vadd.f32 %v1987, 1.0
        %v2020 = vadd.f32 %v1988, 1.0
        %v2021 = vadd.f32 %v1989, 1.0
        %v2022 = vmul.f32 %v1784, %v1990
        %v2023 = vmul.f32 %v1786, %v1991
        %v2024 = vmul.f32 %v1788, %v1992
        %v2025 = vmul.f32 %v1790, %v1993
        %v2026 = vmul.f32 %v1794, %v1994
        %v2027 = vmul.f32 %v1796, %v1995
        %v2028 = vmul.f32 %v1798, %v1996
        %v2029 = vmul.f32 %v1800, %v1997
        %v2030 = vmul.f32 %v1804, %v1998
        %v2031 = vmul.f32 %v1806, %v1999
        %v2032 = vmul.f32 %v1808, %v2000
        %v2033 = vmul.f32 %v1810, %v2001
        %v2034 = vmul.f32 %v1814, %v2002
        %v2035 = vmul.f32 %v1816, %v2003
        %v2036 = vmul.f32 %v1818, %v2004
        %v2037 = vmul.f32 %v1820, %v2005
        %v2038 = vmul.f32 %v1824, %v2006
        %v2039 = vmul.f32 %v1826, %v2007
        %v2040 = vmul.f32 %v1828, %v2008
        %v2041 = vmul.f32 %v1830, %v2009
        %v2042 = vmul.f32 %v1834, %v2010
        %v2043 = vmul.f32 %v1836, %v2011
        %v2044 = vmul.f32 %v1838, %v2012
        %v2045 = vmul.f32 %v1840, %v2013
        %v2046 = vmul.f32 %v1844, %v2014
        %v2047 = vmul.f32 %v1846, %v2015
        %v2048 = vmul.f32 %v1848, %v2016
        %v2049 = vmul.f32 %v1850, %v2017
        %v2050 = vmul.f32 %v1854, %v2018
        %v2051 = vmul.f32 %v1856, %v2019
        %v2052 = vmul.f32 %v1858, %v2020
        %v2053 = vmul.f32 %v1860, %v2021
        %v2054 = vmul.f32 %v1784, 1.442695
        %v2055 = vpow.pop %v2054
        %v2056 = vmul.f32 %v1786, 1.442695
        %v2057 = vpow.pop %v2056
        %v2058 = vmul.f32 %v1788, 1.442695
        %v2059 = vpow.pop %v2058
        %v2060 = vmul.f32 %v1790, 1.442695
        %v2061 = vpow.pop %v2060
        %v2062 = vmul.f32 %v1794, 1.442695
        %v2063 = vpow.pop %v2062
        %v2064 = vmul.f32 %v1796, 1.442695
        %v2065 = vpow.pop %v2064
        %v2066 = vmul.f32 %v1798, 1.442695
        %v2067 = vpow.pop %v2066
        %v2068 = vmul.f32 %v1800, 1.442695
        %v2069 = vpow.pop %v2068
        %v2070 = vmul.f32 %v1804, 1.442695
        %v2071 = vpow.pop %v2070
        %v2072 = vmul.f32 %v1806, 1.442695
        %v2073 = vpow.pop %v2072
        %v2074 = vmul.f32 %v1808, 1.442695
        %v2075 = vpow.pop %v2074
        %v2076 = vmul.f32 %v1810, 1.442695
        %v2077 = vpow.pop %v2076
        %v2078 = vmul.f32 %v1814, 1.442695
        %v2079 = vpow.pop %v2078
        %v2080 = vmul.f32 %v1816, 1.442695
        %v2081 = vpow.pop %v2080
        %v2082 = vmul.f32 %v1818, 1.442695
        %v2083 = vpow.pop %v2082
        %v2084 = vmul.f32 %v1820, 1.442695
        %v2085 = vpow.pop %v2084
        %v2086 = vmul.f32 %v1824, 1.442695
        %v2087 = vpow.pop %v2086
        %v2088 = vmul.f32 %v1826, 1.442695
        %v2089 = vpow.pop %v2088
        %v2090 = vmul.f32 %v1828, 1.442695
        %v2091 = vpow.pop %v2090
        %v2092 = vmul.f32 %v1830, 1.442695
        %v2093 = vpow.pop %v2092
        %v2094 = vmul.f32 %v1834, 1.442695
        %v2095 = vpow.pop %v2094
        %v2096 = vmul.f32 %v1836, 1.442695
        %v2097 = vpow.pop %v2096
        %v2098 = vmul.f32 %v1838, 1.442695
        %v2099 = vpow.pop %v2098
        %v2100 = vmul.f32 %v1840, 1.442695
        %v2101 = vpow.pop %v2100
        %v2102 = vmul.f32 %v1844, 1.442695
        %v2103 = vpow.pop %v2102
        %v2104 = vmul.f32 %v1846, 1.442695
        %v2105 = vpow.pop %v2104
        %v2106 = vmul.f32 %v1848, 1.442695
        %v2107 = vpow.pop %v2106
        %v2108 = vmul.f32 %v1850, 1.442695
        %v2109 = vpow.pop %v2108
        %v2110 = vmul.f32 %v1854, 1.442695
        %v2111 = vpow.pop %v2110
        %v2112 = vmul.f32 %v1856, 1.442695
        %v2113 = vpow.pop %v2112
        %v2114 = vmul.f32 %v1858, 1.442695
        %v2115 = vpow.pop %v2114
        %v2116 = vmul.f32 %v1860, 1.442695
        %v2117 = vpow.pop %v2116
        %v2118 = vsub.f32 %v2055, 1.0
        %v2119 = vsub.f32 %v2057, 1.0
        %v2120 = vsub.f32 %v2059, 1.0
        %v2121 = vsub.f32 %v2061, 1.0
        %v2122 = vsub.f32 %v2063, 1.0
        %v2123 = vsub.f32 %v2065, 1.0
        %v2124 = vsub.f32 %v2067, 1.0
        %v2125 = vsub.f32 %v2069, 1.0
        %v2126 = vsub.f32 %v2071, 1.0
        %v2127 = vsub.f32 %v2073, 1.0
        %v2128 = vsub.f32 %v2075, 1.0
        %v2129 = vsub.f32 %v2077, 1.0
        %v2130 = vsub.f32 %v2079, 1.0
        %v2131 = vsub.f32 %v2081, 1.0
        %v2132 = vsub.f32 %v2083, 1.0
        %v2133 = vsub.f32 %v2085, 1.0
        %v2134 = vsub.f32 %v2087, 1.0
        %v2135 = vsub.f32 %v2089, 1.0
        %v2136 = vsub.f32 %v2091, 1.0
        %v2137 = vsub.f32 %v2093, 1.0
        %v2138 = vsub.f32 %v2095, 1.0
        %v2139 = vsub.f32 %v2097, 1.0
        %v2140 = vsub.f32 %v2099, 1.0
        %v2141 = vsub.f32 %v2101, 1.0
        %v2142 = vsub.f32 %v2103, 1.0
        %v2143 = vsub.f32 %v2105, 1.0
        %v2144 = vsub.f32 %v2107, 1.0
        %v2145 = vsub.f32 %v2109, 1.0
        %v2146 = vsub.f32 %v2111, 1.0
        %v2147 = vsub.f32 %v2113, 1.0
        %v2148 = vsub.f32 %v2115, 1.0
        %v2149 = vsub.f32 %v2117, 1.0
        %v2150 = vsel %vm1926, %v2022, %v2118
        %v2151 = vsel %vm1927, %v2023, %v2119
        %v2152 = vsel %vm1928, %v2024, %v2120
        %v2153 = vsel %vm1929, %v2025, %v2121
        %v2154 = vsel %vm1930, %v2026, %v2122
        %v2155 = vsel %vm1931, %v2027, %v2123
        %v2156 = vsel %vm1932, %v2028, %v2124
        %v2157 = vsel %vm1933, %v2029, %v2125
        %v2158 = vsel %vm1934, %v2030, %v2126
        %v2159 = vsel %vm1935, %v2031, %v2127
        %v2160 = vsel %vm1936, %v2032, %v2128
        %v2161 = vsel %vm1937, %v2033, %v2129
        %v2162 = vsel %vm1938, %v2034, %v2130
        %v2163 = vsel %vm1939, %v2035, %v2131
        %v2164 = vsel %vm1940, %v2036, %v2132
        %v2165 = vsel %vm1941, %v2037, %v2133
        %v2166 = vsel %vm1942, %v2038, %v2134
        %v2167 = vsel %vm1943, %v2039, %v2135
        %v2168 = vsel %vm1944, %v2040, %v2136
        %v2169 = vsel %vm1945, %v2041, %v2137
        %v2170 = vsel %vm1946, %v2042, %v2138
        %v2171 = vsel %vm1947, %v2043, %v2139
        %v2172 = vsel %vm1948, %v2044, %v2140
        %v2173 = vsel %vm1949, %v2045, %v2141
        %v2174 = vsel %vm1950, %v2046, %v2142
        %v2175 = vsel %vm1951, %v2047, %v2143
        %v2176 = vsel %vm1952, %v2048, %v2144
        %v2177 = vsel %vm1953, %v2049, %v2145
        %v2178 = vsel %vm1954, %v2050, %v2146
        %v2179 = vsel %vm1955, %v2051, %v2147
        %v2180 = vsel %vm1956, %v2052, %v2148
        %v2181 = vsel %vm1957, %v2053, %v2149
        %v2182 = vmul.f32 %v2150, 1.6732632
        %v2183 = vmul.f32 %v2151, 1.6732632
        %v2184 = vmul.f32 %v2152, 1.6732632
        %v2185 = vmul.f32 %v2153, 1.6732632
        %v2186 = vmul.f32 %v2154, 1.6732632
        %v2187 = vmul.f32 %v2155, 1.6732632
        %v2188 = vmul.f32 %v2156, 1.6732632
        %v2189 = vmul.f32 %v2157, 1.6732632
        %v2190 = vmul.f32 %v2158, 1.6732632
        %v2191 = vmul.f32 %v2159, 1.6732632
        %v2192 = vmul.f32 %v2160, 1.6732632
        %v2193 = vmul.f32 %v2161, 1.6732632
        %v2194 = vmul.f32 %v2162, 1.6732632
        %v2195 = vmul.f32 %v2163, 1.6732632
        %v2196 = vmul.f32 %v2164, 1.6732632
        %v2197 = vmul.f32 %v2165, 1.6732632
        %v2198 = vmul.f32 %v2166, 1.6732632
        %v2199 = vmul.f32 %v2167, 1.6732632
        %v2200 = vmul.f32 %v2168, 1.6732632
        %v2201 = vmul.f32 %v2169, 1.6732632
        %v2202 = vmul.f32 %v2170, 1.6732632
        %v2203 = vmul.f32 %v2171, 1.6732632
        %v2204 = vmul.f32 %v2172, 1.6732632
        %v2205 = vmul.f32 %v2173, 1.6732632
        %v2206 = vmul.f32 %v2174, 1.6732632
        %v2207 = vmul.f32 %v2175, 1.6732632
        %v2208 = vmul.f32 %v2176, 1.6732632
        %v2209 = vmul.f32 %v2177, 1.6732632
        %v2210 = vmul.f32 %v2178, 1.6732632
        %v2211 = vmul.f32 %v2179, 1.6732632
        %v2212 = vmul.f32 %v2180, 1.6732632
        %v2213 = vmul.f32 %v2181, 1.6732632
        %v2214 = vsel %vm1862, %v1784, %v2182
        %v2215 = vsel %vm1863, %v1786, %v2183
        %v2216 = vsel %vm1864, %v1788, %v2184
        %v2217 = vsel %vm1865, %v1790, %v2185
        %v2218 = vsel %vm1866, %v1794, %v2186
        %v2219 = vsel %vm1867, %v1796, %v2187
        %v2220 = vsel %vm1868, %v1798, %v2188
        %v2221 = vsel %vm1869, %v1800, %v2189
        %v2222 = vsel %vm1870, %v1804, %v2190
        %v2223 = vsel %vm1871, %v1806, %v2191
        %v2224 = vsel %vm1872, %v1808, %v2192
        %v2225 = vsel %vm1873, %v1810, %v2193
        %v2226 = vsel %vm1874, %v1814, %v2194
        %v2227 = vsel %vm1875, %v1816, %v2195
        %v2228 = vsel %vm1876, %v1818, %v2196
        %v2229 = vsel %vm1877, %v1820, %v2197
        %v2230 = vsel %vm1878, %v1824, %v2198
        %v2231 = vsel %vm1879, %v1826, %v2199
        %v2232 = vsel %vm1880, %v1828, %v2200
        %v2233 = vsel %vm1881, %v1830, %v2201
        %v2234 = vsel %vm1882, %v1834, %v2202
        %v2235 = vsel %vm1883, %v1836, %v2203
        %v2236 = vsel %vm1884, %v1838, %v2204
        %v2237 = vsel %vm1885, %v1840, %v2205
        %v2238 = vsel %vm1886, %v1844, %v2206
        %v2239 = vsel %vm1887, %v1846, %v2207
        %v2240 = vsel %vm1888, %v1848, %v2208
        %v2241 = vsel %vm1889, %v1850, %v2209
        %v2242 = vsel %vm1890, %v1854, %v2210
        %v2243 = vsel %vm1891, %v1856, %v2211
        %v2244 = vsel %vm1892, %v1858, %v2212
        %v2245 = vsel %vm1893, %v1860, %v2213
        %v2246 = vmul.f32 %v2214, 1.050701
        %v2247 = vmul.f32 %v2215, 1.050701
        %v2248 = vmul.f32 %v2216, 1.050701
        %v2249 = vmul.f32 %v2217, 1.050701
        %v2250 = vmul.f32 %v2218, 1.050701
        %v2251 = vmul.f32 %v2219, 1.050701
        %v2252 = vmul.f32 %v2220, 1.050701
        %v2253 = vmul.f32 %v2221, 1.050701
        %v2254 = vmul.f32 %v2222, 1.050701
        %v2255 = vmul.f32 %v2223, 1.050701
        %v2256 = vmul.f32 %v2224, 1.050701
        %v2257 = vmul.f32 %v2225, 1.050701
        %v2258 = vmul.f32 %v2226, 1.050701
        %v2259 = vmul.f32 %v2227, 1.050701
        %v2260 = vmul.f32 %v2228, 1.050701
        %v2261 = vmul.f32 %v2229, 1.050701
        %v2262 = vmul.f32 %v2230, 1.050701
        %v2263 = vmul.f32 %v2231, 1.050701
        %v2264 = vmul.f32 %v2232, 1.050701
        %v2265 = vmul.f32 %v2233, 1.050701
        %v2266 = vmul.f32 %v2234, 1.050701
        %v2267 = vmul.f32 %v2235, 1.050701
        %v2268 = vmul.f32 %v2236, 1.050701
        %v2269 = vmul.f32 %v2237, 1.050701
        %v2270 = vmul.f32 %v2238, 1.050701
        %v2271 = vmul.f32 %v2239, 1.050701
        %v2272 = vmul.f32 %v2240, 1.050701
        %v2273 = vmul.f32 %v2241, 1.050701
        %v2274 = vmul.f32 %v2242, 1.050701
        %v2275 = vmul.f32 %v2243, 1.050701
        %v2276 = vmul.f32 %v2244, 1.050701
        %v2277 = vmul.f32 %v2245, 1.050701
        %2278 = vst [vmem:[%s380] sm:$0xff] %v2246
        %2279 = vst [vmem:[%s380 + $0x8] sm:$0xff] %v2247
        %2280 = vst [vmem:[%s380 + $0x10] sm:$0xff] %v2248
        %2281 = vst [vmem:[%s380 + $0x18] sm:$0xff] %v2249
        %2282 = vst [vmem:[%s380 + $0x20] sm:$0xff] %v2250
        %2283 = vst [vmem:[%s380 + $0x28] sm:$0xff] %v2251
        %2284 = vst [vmem:[%s380 + $0x30] sm:$0xff] %v2252
        %2285 = vst [vmem:[%s380 + $0x38] sm:$0xff] %v2253
        %2286 = vst [vmem:[%s380 + $0x40] sm:$0xff] %v2254
        %2287 = vst [vmem:[%s380 + $0x48] sm:$0xff] %v2255
        %2288 = vst [vmem:[%s380 + $0x50] sm:$0xff] %v2256
        %2289 = vst [vmem:[%s380 + $0x58] sm:$0xff] %v2257
        %2290 = vst [vmem:[%s380 + $0x60] sm:$0xff] %v2258
        %2291 = vst [vmem:[%s380 + $0x68] sm:$0xff] %v2259
        %2292 = vst [vmem:[%s380 + $0x70] sm:$0xff] %v2260
        %2293 = vst [vmem:[%s380 + $0x78] sm:$0xff] %v2261
        %2294 = vst [vmem:[%s380 + $0x80] sm:$0xff] %v2262
        %2295 = vst [vmem:[%s380 + $0x88] sm:$0xff] %v2263
        %2296 = vst [vmem:[%s380 + $0x90] sm:$0xff] %v2264
        %2297 = vst [vmem:[%s380 + $0x98] sm:$0xff] %v2265
        %2298 = vst [vmem:[%s380 + $0xa0] sm:$0xff] %v2266
        %2299 = vst [vmem:[%s380 + $0xa8] sm:$0xff] %v2267
        %2300 = vst [vmem:[%s380 + $0xb0] sm:$0xff] %v2268
        %2301 = vst [vmem:[%s380 + $0xb8] sm:$0xff] %v2269
        %2302 = vst [vmem:[%s380 + $0xc0] sm:$0xff] %v2270
        %2303 = vst [vmem:[%s380 + $0xc8] sm:$0xff] %v2271
        %2304 = vst [vmem:[%s380 + $0xd0] sm:$0xff] %v2272
        %2305 = vst [vmem:[%s380 + $0xd8] sm:$0xff] %v2273
        %2306 = vst [vmem:[%s380 + $0xe0] sm:$0xff] %v2274
        %2307 = vst [vmem:[%s380 + $0xe8] sm:$0xff] %v2275
        %2308 = vst [vmem:[%s380 + $0xf0] sm:$0xff] %v2276
        %2309 = vst [vmem:[%s380 + $0xf8] sm:$0xff] %v2277
        %s2310 = sand.u32 %s229, 1
        %s2311 = scalar_lea.sflag [#allocation4], %s2310
        %s2312 = sand.u32 %s229, 1
        %s2313 = smul.addr %s2312, 256
        %s2314 = scalar_lea.vmem [#allocation8], %s2313
        // Predicated region
        $region69: #{autoencoder_forward.1} parent=55 // pred_check
          %p2315 = pneg %p239
        $region70: #{autoencoder_forward.1} parent=55 // pred_check_branch
          %2317 = sbr.rel (%p2315) target = $region72
        $region71: #{autoencoder_forward.1} parent=55 // pred_region
          %s2318 = smul.u32 16, %s27
          %s2320 = ssub.s32 4096, 4096
          %2321 = vsyncadd %s2311, %s2320
          %s2322 = smul.addr %s2318, 2
          %s2323 = smul.addr %s2322, 128
          %s2324 = scalar_lea.hbm %s9, %s2323
          %s2325 = sshll.u32 %s2314, 4
          %s2326 = int_to_ptr.vmem [resolvable:$true] %s2325
          %2331 = dma.vmem_to_hbm [thread:$0]  %s2326, 4096, %s2324, %s2311, 256, 256, 16
        $region72: #{autoencoder_forward.1} parent=55 // pred_fallthru
          _
      $region56: #{autoencoder_forward.1} parent=5 // pred_fallthru
        _
      %p2332 = scmp.le.s32.totalorder 2, %s22
      // Predicated region
      $region73: #{autoencoder_forward.1} parent=5 // pred_check
        %p2333 = pneg %p2332
      $region74: #{autoencoder_forward.1} parent=5 // pred_check_branch
        %2335 = sbr.rel (%p2333) target = $region76
      $region75: #{autoencoder_forward.1} parent=5 // pred_region
        %s2336 = ssub.s32 %s22, 2
        // Predicated region
        $region77: #{autoencoder_forward.1} parent=75 // pred_check
          %p2337 = pneg %p245
        $region78: #{autoencoder_forward.1} parent=75 // pred_check_branch
          %2339 = sbr.rel (%p2337) target = $region80
        $region79: #{autoencoder_forward.1} parent=75 // pred_region
          %s2340 = sand.u32 %s230, 1
          %s2341 = scalar_lea.sflag [#allocation4], %s2340
          %s2342 = sand.u32 %s230, 1
          %s2343 = smul.addr %s2342, 256
          %s2344 = scalar_lea.vmem [#allocation8], %s2343
          %2345 = dma.done %s2341, 4096
        $region80: #{autoencoder_forward.1} parent=75 // pred_fallthru
          _
      $region76: #{autoencoder_forward.1} parent=5 // pred_fallthru
        _
    $region6: #{autoencoder_forward.1} parent=1 // loop_footer
      %s26 = sadd.s32 1, %s22
    $region7: #{autoencoder_forward.1} parent=1 // loop_footer_branch
      %21 = sbr.rel target = $region3
    $region8: #{autoencoder_forward.1} parent=1 // loop_exit
      _
    %2346 = vsyncpa [#allocation3], 1
    %s2347 = scalar_lea.sflag [#allocation3], 1
    %2348 = vsyncpa %s2347, 1
    %2349 = vsyncpa [#allocation6], 1
    %2350 = vsyncpa [#allocation4], 1
    %s2351 = scalar_lea.sflag [#allocation4], 1
    %2352 = vsyncpa %s2351, 1

</llo_original>
